<compile_context>
chip_gen: v6e
topology: v6e:2x2x1
jax: 0.10.0
libtpu: 0.0.40
codegen_flags: <defaults>
</compile_context>

<pallas_src>
import functools

import jax
import jax.numpy as jnp
from jax.experimental import pallas as pl
from jax.experimental.pallas import tpu as pltpu

EPS = 1e-5
FC_PAD = 128      # padded feature width for the classifier block
ROW_PAD = 8       # padded batch rows for the classifier block


def _ceil_to(x, m):
    return ((x + m - 1) // m) * m


# ---------------------------------------------------------------------------
# Pallas kernels: single-block fused MXU matmuls + VPU/EUP epilogues.
# ---------------------------------------------------------------------------
def _vmem_call(kernel, out_shape, *args):
    """Whole-array, single-invocation pallas_call with everything in VMEM."""
    return pl.pallas_call(
        kernel,
        out_shape=out_shape,
        in_specs=[pl.BlockSpec(memory_space=pltpu.MemorySpace.VMEM)] * len(args),
        out_specs=pl.BlockSpec(memory_space=pltpu.MemorySpace.VMEM),
    )(*args)


def _mm_bias_act_kernel(a_ref, b_ref, bias_ref, o_ref, *, relu):
    z = jnp.dot(a_ref[...], b_ref[...], preferred_element_type=jnp.float32)
    z = z + bias_ref[...]
    if relu:
        z = jnp.maximum(z, 0.0)
    o_ref[...] = z


def _mm_div_kernel(a_ref, b_ref, r_ref, o_ref):
    # z+ rule step 1: z = dot, s = r / (z + eps)   (fused epilogue)
    z = jnp.dot(a_ref[...], b_ref[...], preferred_element_type=jnp.float32)
    o_ref[...] = r_ref[...] / (z + EPS)


def _mm_mul_kernel(a_ref, b_ref, act_ref, o_ref):
    # z+ rule step 2: c = dot, rel = a * c          (fused epilogue)
    c = jnp.dot(a_ref[...], b_ref[...], preferred_element_type=jnp.float32)
    o_ref[...] = act_ref[...] * c


def _pool_lrp_kernel(a_ref, r_ref, z_ref, o_ref, *, inv_k):
    # rel = a * upsample(r/(z+eps)) / k^2  (upsampled r, z passed in)
    o_ref[...] = a_ref[...] * (r_ref[...] / (z_ref[...] + EPS)) * inv_k


def _softmax_kernel(x_ref, o_ref, *, n_valid):
    x = x_ref[...]
    col = jax.lax.broadcasted_iota(jnp.int32, x.shape, 1)
    x = jnp.where(col < n_valid, x, -1e30)
    m = jnp.max(x, axis=-1, keepdims=True)
    e = jnp.exp(x - m)
    o_ref[...] = e / jnp.sum(e, axis=-1, keepdims=True)


def mm_bias_act(a_bf16, b_bf16, bias_f32, *, relu):
    out = jax.ShapeDtypeStruct((a_bf16.shape[0], b_bf16.shape[1]), jnp.float32)
    return _vmem_call(functools.partial(_mm_bias_act_kernel, relu=relu),
                      out, a_bf16, b_bf16, bias_f32)


def mm_div(a_bf16, b_bf16, r_f32):
    out = jax.ShapeDtypeStruct((a_bf16.shape[0], b_bf16.shape[1]), jnp.float32)
    return _vmem_call(_mm_div_kernel, out, a_bf16, b_bf16, r_f32)


def mm_mul(a_bf16, b_bf16, act_f32):
    out = jax.ShapeDtypeStruct((a_bf16.shape[0], b_bf16.shape[1]), jnp.float32)
    return _vmem_call(_mm_mul_kernel, out, a_bf16, b_bf16, act_f32)


def pool_lrp_ew(a2d, r_up2d, z_up2d, inv_k):
    return _vmem_call(functools.partial(_pool_lrp_kernel, inv_k=inv_k),
                      jax.ShapeDtypeStruct(a2d.shape, jnp.float32),
                      a2d, r_up2d, z_up2d)


def softmax_masked(x_pad, n_valid):
    return _vmem_call(functools.partial(_softmax_kernel, n_valid=n_valid),
                      jax.ShapeDtypeStruct(x_pad.shape, jnp.float32), x_pad)


# ---------------------------------------------------------------------------
# Plain-JAX glue (tiny tensors): im2col, weight packing, pooling reshapes.
# Conv path layout is channel-major: (C, N, H, W) <-> (C, N*H*W).
# ---------------------------------------------------------------------------
def _im2col(x_chw, kh, kw, pad, k_pad):
    C, N, H, W = x_chw.shape
    xp = jnp.pad(x_chw, ((0, 0), (0, 0), (pad, pad), (pad, pad)))
    Ho = H + 2 * pad - kh + 1
    Wo = W + 2 * pad - kw + 1
    cols = [xp[:, :, i:i + Ho, j:j + Wo] for i in range(kh) for j in range(kw)]
    col = jnp.stack(cols, axis=1).reshape(C * kh * kw, N * Ho * Wo)
    if k_pad > C * kh * kw:
        col = jnp.pad(col, ((0, k_pad - C * kh * kw), (0, 0)))
    return col.astype(jnp.bfloat16), (Ho, Wo)


def _wmat(w, k_pad):
    o = w.shape[0]
    m = w.reshape(o, -1)
    if k_pad > m.shape[1]:
        m = jnp.pad(m, ((0, 0), (0, k_pad - m.shape[1])))
    return m.astype(jnp.bfloat16)


def conv_forward(x_chw, w, b, *, pad=1, relu=True):
    """stride-1 'same' conv in CNHW layout; returns activation and its im2col."""
    O, Ci, kh, kw = w.shape
    _, N, H, W = x_chw.shape
    k_pad = _ceil_to(Ci * kh * kw, 8)
    cols, (Ho, Wo) = _im2col(x_chw, kh, kw, pad, k_pad)
    out2d = mm_bias_act(_wmat(w, k_pad), cols,
                        b.reshape(O, 1).astype(jnp.float32), relu=relu)
    return out2d.reshape(O, N, Ho, Wo), cols


def conv_lrp(a_chw, w, r_chw, *, pad=1, cols_a=None):
    """z+ rule for conv: z=conv(a,wp); s=r/(z+eps); c=conv_T(s,wp); rel=a*c."""
    O, Ci, kh, kw = w.shape
    C, N, H, W = a_chw.shape
    wp = jnp.maximum(w, 0.0)
    k_pad = _ceil_to(Ci * kh * kw, 8)
    if cols_a is None:
        cols_a, _ = _im2col(a_chw, kh, kw, pad, k_pad)
    r2d = r_chw.reshape(O, -1).astype(jnp.float32)
    s2d = mm_div(_wmat(wp, k_pad), cols_a, r2d)                  # (O, N*H*W)

    wt = jnp.flip(wp, axis=(2, 3)).transpose(1, 0, 2, 3)          # (C, O, kh, kw)
    kt_pad = _ceil_to(O * kh * kw, 8)
    cols_s, _ = _im2col(s2d.reshape(O, N, H, W), kh, kw, kh - 1 - pad, kt_pad)
    a2d = a_chw.reshape(C, -1).astype(jnp.float32)
    rel2d = mm_mul(_wmat(wt, kt_pad), cols_s, a2d)                # (C, N*H*W)
    return rel2d.reshape(C, N, H, W)


def avg_pool(x_chw, k):
    C, N, H, W = x_chw.shape
    return x_chw.reshape(C, N, H // k, k, W // k, k).mean(axis=(3, 5))


def pool_lrp(a_chw, r_pool, k):
    C, N, H, W = a_chw.shape
    z = avg_pool(a_chw, k)
    z_up = jnp.repeat(jnp.repeat(z, k, axis=2), k, axis=3)
    r_up = jnp.repeat(jnp.repeat(r_pool, k, axis=2), k, axis=3)
    rel = pool_lrp_ew(a_chw.reshape(C, -1), r_up.reshape(C, -1),
                      z_up.reshape(C, -1), 1.0 / float(k * k))
    return rel.reshape(C, N, H, W)


def linear_lrp(a_pad, wp_pad, wpT_pad, r_pad):
    """z+ rule for linear on padded (8,128) operands; padding stays zero."""
    s = mm_div(a_pad.astype(jnp.bfloat16), wpT_pad, r_pad)
    return mm_mul(s.astype(jnp.bfloat16), wp_pad, a_pad)


# ---------------------------------------------------------------------------
# LRPModel.forward equivalent
# ---------------------------------------------------------------------------
def lrp_model_forward(x, params):
    N, C_in, H, W = x.shape
    w1, b1 = params["conv1_w"], params["conv1_b"]
    w2, b2 = params["conv2_w"], params["conv2_b"]
    fw1, fb1 = params["fc1_w"], params["fc1_b"]
    fw2, fb2 = params["fc2_w"], params["fc2_b"]

    # ---------------- forward pass (ReLU fused into conv/linear epilogues) ---
    x_chw = x.transpose(1, 0, 2, 3)                         # (C, N, H, W)
    relu1, _ = conv_forward(x_chw, w1, b1, relu=True)       # (8, N, 16, 16)
    pool1 = avg_pool(relu1, 2)                              # (8, N, 8, 8)
    relu2, cols2 = conv_forward(pool1, w2, b2, relu=True)   # (8, N, 8, 8)
    pool2 = avg_pool(relu2, 2)                              # (8, N, 4, 4)
    adpool = avg_pool(pool2, 2)                             # (8, N, 2, 2)  AdaptiveAvgPool2d((2,2))

    feat = adpool.shape[0] * adpool.shape[2] * adpool.shape[3]   # 32
    flat = adpool.transpose(1, 0, 2, 3).reshape(N, feat)    # torch Flatten order
    # pad ONCE for the classifier block; stay padded until un-flatten.
    a0 = jnp.zeros((ROW_PAD, FC_PAD), jnp.float32).at[:N, :feat].set(flat)

    n_hid, n_out = fw1.shape[0], fw2.shape[0]
    w1T_pad = jnp.zeros((FC_PAD, FC_PAD), jnp.bfloat16).at[:feat, :n_hid].set(
        fw1.T.astype(jnp.bfloat16))
    b1_pad = jnp.zeros((1, FC_PAD), jnp.float32).at[0, :n_hid].set(fb1)
    w2T_pad = jnp.zeros((FC_PAD, FC_PAD), jnp.bfloat16).at[:n_hid, :n_out].set(
        fw2.T.astype(jnp.bfloat16))
    b2_pad = jnp.zeros((1, FC_PAD), jnp.float32).at[0, :n_out].set(fb2)

    a1 = mm_bias_act(a0.astype(jnp.bfloat16), w1T_pad, b1_pad, relu=True)      # fc1+ReLU (+Dropout eval)
    logits = mm_bias_act(a1.astype(jnp.bfloat16), w2T_pad, b2_pad, relu=False)  # fc2

    # ---------------- LRP backward pass ---------------------------------------
    relevance = softmax_masked(logits, n_out)               # seed: softmax(out, dim=-1)

    # classifier (z+ rule: clamped positive weights, zero bias)
    wp2 = jnp.maximum(fw2, 0.0)
    wp2T_pad = jnp.zeros((FC_PAD, FC_PAD), jnp.bfloat16).at[:n_hid, :n_out].set(
        wp2.T.astype(jnp.bfloat16))
    wp2_pad = jnp.zeros((FC_PAD, FC_PAD), jnp.bfloat16).at[:n_out, :n_hid].set(
        wp2.astype(jnp.bfloat16))
    relevance = linear_lrp(a1, wp2_pad, wp2T_pad, relevance)     # fc2
    # Dropout / ReLU: pass-through
    wp1 = jnp.maximum(fw1, 0.0)
    wp1T_pad = jnp.zeros((FC_PAD, FC_PAD), jnp.bfloat16).at[:feat, :n_hid].set(
        wp1.T.astype(jnp.bfloat16))
    wp1_pad = jnp.zeros((FC_PAD, FC_PAD), jnp.bfloat16).at[:n_hid, :feat].set(
        wp1.astype(jnp.bfloat16))
    relevance = linear_lrp(a0, wp1_pad, wp1T_pad, relevance)     # fc1

    # Flatten^-1: slice away the classifier padding, back to (C, N, h, w)
    relevance = relevance[:N, :feat].reshape(N, adpool.shape[0],
                                             adpool.shape[2], adpool.shape[3])
    relevance = relevance.transpose(1, 0, 2, 3)

    relevance = pool_lrp(pool2, relevance, 2)               # AdaptiveAvgPool2d((2,2))
    relevance = pool_lrp(relu2, relevance, 2)               # AvgPool2d(2)
    # ReLU: pass-through
    relevance = conv_lrp(pool1, w2, relevance, cols_a=cols2)  # conv2 (reuse fwd im2col)
    relevance = pool_lrp(relu1, relevance, 2)               # AvgPool2d(2)
    # ReLU: pass-through
    ones_chw = jnp.ones_like(x_chw)                         # reference seeds conv1 with ones_like(x)
    relevance = conv_lrp(ones_chw, w1, relevance)           # conv1

    # permute(0,2,3,1).sum(-1).squeeze() == channel-sum in CNHW layout
    out = relevance.sum(axis=0)                             # (N, H, W)
    return jnp.squeeze(out)


if __name__ == "__main__":
    key = jax.random.PRNGKey(0)
    kx, k1, k2, k3, k4, kb1, kb2, kb3, kb4 = jax.random.split(key, 9)
    x = jax.random.normal(kx, (2, 4, 16, 16), jnp.float32)
    params = {
        "conv1_w": 0.1 * jax.random.normal(k1, (8, 4, 3, 3), jnp.float32),
        "conv1_b": 0.01 * jax.random.normal(kb1, (8,), jnp.float32),
        "conv2_w": 0.1 * jax.random.normal(k2, (8, 8, 3, 3), jnp.float32),
        "conv2_b": 0.01 * jax.random.normal(kb2, (8,), jnp.float32),
        "fc1_w": 0.1 * jax.random.normal(k3, (32, 32), jnp.float32),
        "fc1_b": 0.01 * jax.random.normal(kb3, (32,), jnp.float32),
        "fc2_w": 0.1 * jax.random.normal(k4, (10, 32), jnp.float32),
        "fc2_b": 0.01 * jax.random.normal(kb4, (10,), jnp.float32),
    }
    out = jax.jit(lrp_model_forward)(x, params)
    out = jax.block_until_ready(out)
    assert out.shape == (2, 16, 16), out.shape
    assert bool(jnp.all(jnp.isfinite(out)))
    print("KERNEL_OK")
</pallas_src>

<mosaic_0001>
module attributes {stable_mosaic.version = 11 : i64} {
  func.func @_mm_bias_act_kernel(%arg0: memref<8x40xbf16, #tpu.memory_space<vmem>>, %arg1: memref<40x512xbf16, #tpu.memory_space<vmem>>, %arg2: memref<8x1xf32, #tpu.memory_space<vmem>>, %arg3: memref<8x512xf32, #tpu.memory_space<vmem>>) attributes {dimension_semantics = [], scalar_prefetch = 0 : i64, scratch_operands = 0 : i64, tpu.core_type = #tpu.core_type<tc>} {
    %c0 = arith.constant 0 : index
    %c0_0 = arith.constant 0 : index
    %0 = vector.load %arg0[%c0, %c0_0] : memref<8x40xbf16, #tpu.memory_space<vmem>>, vector<8x40xbf16>
    %c0_1 = arith.constant 0 : index
    %c0_2 = arith.constant 0 : index
    %1 = vector.load %arg1[%c0_1, %c0_2] : memref<40x512xbf16, #tpu.memory_space<vmem>>, vector<40x512xbf16>
    %cst = arith.constant dense<0.000000e+00> : vector<8x512xf32>
    %2 = tpu.matmul %0, %1, %cst {dimension_numbers = #tpu.dot_dimension_numbers<[1], [0], [0], [1], [0, 0, 1, 1], [], []>} : vector<8x40xbf16>, vector<40x512xbf16>, vector<8x512xf32> -> vector<8x512xf32>
    %c0_3 = arith.constant 0 : index
    %c0_4 = arith.constant 0 : index
    %3 = vector.load %arg2[%c0_3, %c0_4] : memref<8x1xf32, #tpu.memory_space<vmem>>, vector<8x1xf32>
    %4 = vector.broadcast %3 : vector<8x1xf32> to vector<8x512xf32>
    %5 = arith.addf %2, %4 : vector<8x512xf32>
    %cst_5 = arith.constant 0.000000e+00 : f32
    %6 = vector.broadcast %cst_5 : f32 to vector<8x512xf32>
    %7 = arith.maximumf %5, %6 : vector<8x512xf32>
    %c0_6 = arith.constant 0 : index
    %c0_7 = arith.constant 0 : index
    %8 = vector.load %arg3[%c0_6, %c0_7] : memref<8x512xf32, #tpu.memory_space<vmem>>, vector<8x512xf32>
    tpu.vector_store %arg3[%c0_6, %c0_7], %7 {strides = array<i32>} : memref<8x512xf32, #tpu.memory_space<vmem>>, vector<8x512xf32>,
    return
  }
}

module attributes {stable_mosaic.version = 11 : i64} {
  func.func @_mm_bias_act_kernel(%arg0: memref<8x72xbf16, #tpu.memory_space<vmem>>, %arg1: memref<72x128xbf16, #tpu.memory_space<vmem>>, %arg2: memref<8x1xf32, #tpu.memory_space<vmem>>, %arg3: memref<8x128xf32, #tpu.memory_space<vmem>>) attributes {dimension_semantics = [], scalar_prefetch = 0 : i64, scratch_operands = 0 : i64, tpu.core_type = #tpu.core_type<tc>} {
    %c0 = arith.constant 0 : index
    %c0_0 = arith.constant 0 : index
    %0 = vector.load %arg0[%c0, %c0_0] : memref<8x72xbf16, #tpu.memory_space<vmem>>, vector<8x72xbf16>
    %c0_1 = arith.constant 0 : index
    %c0_2 = arith.constant 0 : index
    %1 = vector.load %arg1[%c0_1, %c0_2] : memref<72x128xbf16, #tpu.memory_space<vmem>>, vector<72x128xbf16>
    %cst = arith.constant dense<0.000000e+00> : vector<8x128xf32>
    %2 = tpu.matmul %0, %1, %cst {dimension_numbers = #tpu.dot_dimension_numbers<[1], [0], [0], [1], [0, 0, 1, 1], [], []>} : vector<8x72xbf16>, vector<72x128xbf16>, vector<8x128xf32> -> vector<8x128xf32>
    %c0_3 = arith.constant 0 : index
    %c0_4 = arith.constant 0 : index
    %3 = vector.load %arg2[%c0_3, %c0_4] : memref<8x1xf32, #tpu.memory_space<vmem>>, vector<8x1xf32>
    %4 = vector.broadcast %3 : vector<8x1xf32> to vector<8x128xf32>
    %5 = arith.addf %2, %4 : vector<8x128xf32>
    %cst_5 = arith.constant 0.000000e+00 : f32
    %6 = vector.broadcast %cst_5 : f32 to vector<8x128xf32>
    %7 = arith.maximumf %5, %6 : vector<8x128xf32>
    %c0_6 = arith.constant 0 : index
    %c0_7 = arith.constant 0 : index
    %8 = vector.load %arg3[%c0_6, %c0_7] : memref<8x128xf32, #tpu.memory_space<vmem>>, vector<8x128xf32>
    tpu.vector_store %arg3[%c0_6, %c0_7], %7 {strides = array<i32>} : memref<8x128xf32, #tpu.memory_space<vmem>>, vector<8x128xf32>,
    return
  }
}

module attributes {stable_mosaic.version = 11 : i64} {
  func.func @_mm_bias_act_kernel(%arg0: memref<8x128xbf16, #tpu.memory_space<vmem>>, %arg1: memref<128x128xbf16, #tpu.memory_space<vmem>>, %arg2: memref<1x128xf32, #tpu.memory_space<vmem>>, %arg3: memref<8x128xf32, #tpu.memory_space<vmem>>) attributes {dimension_semantics = [], scalar_prefetch = 0 : i64, scratch_operands = 0 : i64, tpu.core_type = #tpu.core_type<tc>} {
    %c0 = arith.constant 0 : index
    %c0_0 = arith.constant 0 : index
    %0 = vector.load %arg0[%c0, %c0_0] : memref<8x128xbf16, #tpu.memory_space<vmem>>, vector<8x128xbf16>
    %c0_1 = arith.constant 0 : index
    %c0_2 = arith.constant 0 : index
    %1 = vector.load %arg1[%c0_1, %c0_2] : memref<128x128xbf16, #tpu.memory_space<vmem>>, vector<128x128xbf16>
    %cst = arith.constant dense<0.000000e+00> : vector<8x128xf32>
    %2 = tpu.matmul %0, %1, %cst {dimension_numbers = #tpu.dot_dimension_numbers<[1], [0], [0], [1], [0, 0, 1, 1], [], []>} : vector<8x128xbf16>, vector<128x128xbf16>, vector<8x128xf32> -> vector<8x128xf32>
    %c0_3 = arith.constant 0 : index
    %c0_4 = arith.constant 0 : index
    %3 = vector.load %arg2[%c0_3, %c0_4] : memref<1x128xf32, #tpu.memory_space<vmem>>, vector<1x128xf32>
    %4 = vector.broadcast %3 : vector<1x128xf32> to vector<8x128xf32>
    %5 = arith.addf %2, %4 : vector<8x128xf32>
    %cst_5 = arith.constant 0.000000e+00 : f32
    %6 = vector.broadcast %cst_5 : f32 to vector<8x128xf32>
    %7 = arith.maximumf %5, %6 : vector<8x128xf32>
    %c0_6 = arith.constant 0 : index
    %c0_7 = arith.constant 0 : index
    %8 = vector.load %arg3[%c0_6, %c0_7] : memref<8x128xf32, #tpu.memory_space<vmem>>, vector<8x128xf32>
    tpu.vector_store %arg3[%c0_6, %c0_7], %7 {strides = array<i32>} : memref<8x128xf32, #tpu.memory_space<vmem>>, vector<8x128xf32>,
    return
  }
}

module attributes {stable_mosaic.version = 11 : i64} {
  func.func @_softmax_kernel(%arg0: memref<8x128xf32, #tpu.memory_space<vmem>>, %arg1: memref<8x128xf32, #tpu.memory_space<vmem>>) attributes {dimension_semantics = [], scalar_prefetch = 0 : i64, scratch_operands = 0 : i64, tpu.core_type = #tpu.core_type<tc>} {
    %c0 = arith.constant 0 : index
    %c0_0 = arith.constant 0 : index
    %0 = vector.load %arg0[%c0, %c0_0] : memref<8x128xf32, #tpu.memory_space<vmem>>, vector<8x128xf32>
    %1 = tpu.iota {dimensions = array<i32: 1>} : vector<8x128xi32>
    %c10_i32 = arith.constant 10 : i32
    %2 = vector.broadcast %c10_i32 : i32 to vector<8x128xi32>
    %3 = arith.cmpi slt, %1, %2 : vector<8x128xi32>
    %cst = arith.constant -1.000000e+30 : f32
    %4 = vector.broadcast %cst : f32 to vector<8x128xf32>
    %5 = arith.select %3, %0, %4 : vector<8x128xi1>, vector<8x128xf32>
    %cst_1 = arith.constant dense<0xFF800000> : vector<8xf32>
    %6 = vector.multi_reduction <maximumf>, %5, %cst_1 [1] : vector<8x128xf32> to vector<8xf32>
    %7 = vector.shape_cast %6 : vector<8xf32> to vector<8x1xf32>
    %8 = vector.broadcast %7 : vector<8x1xf32> to vector<8x128xf32>
    %9 = arith.subf %5, %8 : vector<8x128xf32>
    %10 = math.exp %9 : vector<8x128xf32>
    %cst_2 = arith.constant dense<0.000000e+00> : vector<8xf32>
    %11 = vector.multi_reduction <add>, %10, %cst_2 [1] : vector<8x128xf32> to vector<8xf32>
    %12 = vector.shape_cast %11 : vector<8xf32> to vector<8x1xf32>
    %13 = vector.broadcast %12 : vector<8x1xf32> to vector<8x128xf32>
    %14 = arith.divf %10, %13 : vector<8x128xf32>
    %c0_3 = arith.constant 0 : index
    %c0_4 = arith.constant 0 : index
    %15 = vector.load %arg1[%c0_3, %c0_4] : memref<8x128xf32, #tpu.memory_space<vmem>>, vector<8x128xf32>
    tpu.vector_store %arg1[%c0_3, %c0_4], %14 {strides = array<i32>} : memref<8x128xf32, #tpu.memory_space<vmem>>, vector<8x128xf32>,
    return
  }
}

module attributes {stable_mosaic.version = 11 : i64} {
  func.func @_mm_div_kernel(%arg0: memref<8x128xbf16, #tpu.memory_space<vmem>>, %arg1: memref<128x128xbf16, #tpu.memory_space<vmem>>, %arg2: memref<8x128xf32, #tpu.memory_space<vmem>>, %arg3: memref<8x128xf32, #tpu.memory_space<vmem>>) attributes {dimension_semantics = [], scalar_prefetch = 0 : i64, scratch_operands = 0 : i64, tpu.core_type = #tpu.core_type<tc>} {
    %c0 = arith.constant 0 : index
    %c0_0 = arith.constant 0 : index
    %0 = vector.load %arg0[%c0, %c0_0] : memref<8x128xbf16, #tpu.memory_space<vmem>>, vector<8x128xbf16>
    %c0_1 = arith.constant 0 : index
    %c0_2 = arith.constant 0 : index
    %1 = vector.load %arg1[%c0_1, %c0_2] : memref<128x128xbf16, #tpu.memory_space<vmem>>, vector<128x128xbf16>
    %cst = arith.constant dense<0.000000e+00> : vector<8x128xf32>
    %2 = tpu.matmul %0, %1, %cst {dimension_numbers = #tpu.dot_dimension_numbers<[1], [0], [0], [1], [0, 0, 1, 1], [], []>} : vector<8x128xbf16>, vector<128x128xbf16>, vector<8x128xf32> -> vector<8x128xf32>
    %c0_3 = arith.constant 0 : index
    %c0_4 = arith.constant 0 : index
    %3 = vector.load %arg2[%c0_3, %c0_4] : memref<8x128xf32, #tpu.memory_space<vmem>>, vector<8x128xf32>
    %cst_5 = arith.constant 9.99999974E-6 : f32
    %4 = vector.broadcast %cst_5 : f32 to vector<8x128xf32>
    %5 = arith.addf %2, %4 : vector<8x128xf32>
    %6 = arith.divf %3, %5 : vector<8x128xf32>
    %c0_6 = arith.constant 0 : index
    %c0_7 = arith.constant 0 : index
    %7 = vector.load %arg3[%c0_6, %c0_7] : memref<8x128xf32, #tpu.memory_space<vmem>>, vector<8x128xf32>
    tpu.vector_store %arg3[%c0_6, %c0_7], %6 {strides = array<i32>} : memref<8x128xf32, #tpu.memory_space<vmem>>, vector<8x128xf32>,
    return
  }
}

module attributes {stable_mosaic.version = 11 : i64} {
  func.func @_mm_bias_act_kernel(%arg0: memref<8x128xbf16, #tpu.memory_space<vmem>>, %arg1: memref<128x128xbf16, #tpu.memory_space<vmem>>, %arg2: memref<1x128xf32, #tpu.memory_space<vmem>>, %arg3: memref<8x128xf32, #tpu.memory_space<vmem>>) attributes {dimension_semantics = [], scalar_prefetch = 0 : i64, scratch_operands = 0 : i64, tpu.core_type = #tpu.core_type<tc>} {
    %c0 = arith.constant 0 : index
    %c0_0 = arith.constant 0 : index
    %0 = vector.load %arg0[%c0, %c0_0] : memref<8x128xbf16, #tpu.memory_space<vmem>>, vector<8x128xbf16>
    %c0_1 = arith.constant 0 : index
    %c0_2 = arith.constant 0 : index
    %1 = vector.load %arg1[%c0_1, %c0_2] : memref<128x128xbf16, #tpu.memory_space<vmem>>, vector<128x128xbf16>
    %cst = arith.constant dense<0.000000e+00> : vector<8x128xf32>
    %2 = tpu.matmul %0, %1, %cst {dimension_numbers = #tpu.dot_dimension_numbers<[1], [0], [0], [1], [0, 0, 1, 1], [], []>} : vector<8x128xbf16>, vector<128x128xbf16>, vector<8x128xf32> -> vector<8x128xf32>
    %c0_3 = arith.constant 0 : index
    %c0_4 = arith.constant 0 : index
    %3 = vector.load %arg2[%c0_3, %c0_4] : memref<1x128xf32, #tpu.memory_space<vmem>>, vector<1x128xf32>
    %4 = vector.broadcast %3 : vector<1x128xf32> to vector<8x128xf32>
    %5 = arith.addf %2, %4 : vector<8x128xf32>
    %c0_5 = arith.constant 0 : index
    %c0_6 = arith.constant 0 : index
    %6 = vector.load %arg3[%c0_5, %c0_6] : memref<8x128xf32, #tpu.memory_space<vmem>>, vector<8x128xf32>
    tpu.vector_store %arg3[%c0_5, %c0_6], %5 {strides = array<i32>} : memref<8x128xf32, #tpu.memory_space<vmem>>, vector<8x128xf32>,
    return
  }
}

module attributes {stable_mosaic.version = 11 : i64} {
  func.func @_mm_mul_kernel(%arg0: memref<8x128xbf16, #tpu.memory_space<vmem>>, %arg1: memref<128x128xbf16, #tpu.memory_space<vmem>>, %arg2: memref<8x128xf32, #tpu.memory_space<vmem>>, %arg3: memref<8x128xf32, #tpu.memory_space<vmem>>) attributes {dimension_semantics = [], scalar_prefetch = 0 : i64, scratch_operands = 0 : i64, tpu.core_type = #tpu.core_type<tc>} {
    %c0 = arith.constant 0 : index
    %c0_0 = arith.constant 0 : index
    %0 = vector.load %arg0[%c0, %c0_0] : memref<8x128xbf16, #tpu.memory_space<vmem>>, vector<8x128xbf16>
    %c0_1 = arith.constant 0 : index
    %c0_2 = arith.constant 0 : index
    %1 = vector.load %arg1[%c0_1, %c0_2] : memref<128x128xbf16, #tpu.memory_space<vmem>>, vector<128x128xbf16>
    %cst = arith.constant dense<0.000000e+00> : vector<8x128xf32>
    %2 = tpu.matmul %0, %1, %cst {dimension_numbers = #tpu.dot_dimension_numbers<[1], [0], [0], [1], [0, 0, 1, 1], [], []>} : vector<8x128xbf16>, vector<128x128xbf16>, vector<8x128xf32> -> vector<8x128xf32>
    %c0_3 = arith.constant 0 : index
    %c0_4 = arith.constant 0 : index
    %3 = vector.load %arg2[%c0_3, %c0_4] : memref<8x128xf32, #tpu.memory_space<vmem>>, vector<8x128xf32>
    %4 = arith.mulf %3, %2 : vector<8x128xf32>
    %c0_5 = arith.constant 0 : index
    %c0_6 = arith.constant 0 : index
    %5 = vector.load %arg3[%c0_5, %c0_6] : memref<8x128xf32, #tpu.memory_space<vmem>>, vector<8x128xf32>
    tpu.vector_store %arg3[%c0_5, %c0_6], %4 {strides = array<i32>} : memref<8x128xf32, #tpu.memory_space<vmem>>, vector<8x128xf32>,
    return
  }
}

module attributes {stable_mosaic.version = 11 : i64} {
  func.func @_pool_lrp_kernel(%arg0: memref<8x32xf32, #tpu.memory_space<vmem>>, %arg1: memref<8x32xf32, #tpu.memory_space<vmem>>, %arg2: memref<8x32xf32, #tpu.memory_space<vmem>>, %arg3: memref<8x32xf32, #tpu.memory_space<vmem>>) attributes {dimension_semantics = [], scalar_prefetch = 0 : i64, scratch_operands = 0 : i64, tpu.core_type = #tpu.core_type<tc>} {
    %c0 = arith.constant 0 : index
    %c0_0 = arith.constant 0 : index
    %0 = vector.load %arg0[%c0, %c0_0] : memref<8x32xf32, #tpu.memory_space<vmem>>, vector<8x32xf32>
    %c0_1 = arith.constant 0 : index
    %c0_2 = arith.constant 0 : index
    %1 = vector.load %arg1[%c0_1, %c0_2] : memref<8x32xf32, #tpu.memory_space<vmem>>, vector<8x32xf32>
    %c0_3 = arith.constant 0 : index
    %c0_4 = arith.constant 0 : index
    %2 = vector.load %arg2[%c0_3, %c0_4] : memref<8x32xf32, #tpu.memory_space<vmem>>, vector<8x32xf32>
    %cst = arith.constant 9.99999974E-6 : f32
    %3 = vector.broadcast %cst : f32 to vector<8x32xf32>
    %4 = arith.addf %2, %3 : vector<8x32xf32>
    %5 = arith.divf %1, %4 : vector<8x32xf32>
    %6 = arith.mulf %0, %5 : vector<8x32xf32>
    %cst_5 = arith.constant 2.500000e-01 : f32
    %7 = vector.broadcast %cst_5 : f32 to vector<8x32xf32>
    %8 = arith.mulf %6, %7 : vector<8x32xf32>
    %c0_6 = arith.constant 0 : index
    %c0_7 = arith.constant 0 : index
    %9 = vector.load %arg3[%c0_6, %c0_7] : memref<8x32xf32, #tpu.memory_space<vmem>>, vector<8x32xf32>
    tpu.vector_store %arg3[%c0_6, %c0_7], %8 {strides = array<i32>} : memref<8x32xf32, #tpu.memory_space<vmem>>, vector<8x32xf32>,
    return
  }
}

module attributes {stable_mosaic.version = 11 : i64} {
  func.func @_pool_lrp_kernel(%arg0: memref<8x128xf32, #tpu.memory_space<vmem>>, %arg1: memref<8x128xf32, #tpu.memory_space<vmem>>, %arg2: memref<8x128xf32, #tpu.memory_space<vmem>>, %arg3: memref<8x128xf32, #tpu.memory_space<vmem>>) attributes {dimension_semantics = [], scalar_prefetch = 0 : i64, scratch_operands = 0 : i64, tpu.core_type = #tpu.core_type<tc>} {
    %c0 = arith.constant 0 : index
    %c0_0 = arith.constant 0 : index
    %0 = vector.load %arg0[%c0, %c0_0] : memref<8x128xf32, #tpu.memory_space<vmem>>, vector<8x128xf32>
    %c0_1 = arith.constant 0 : index
    %c0_2 = arith.constant 0 : index
    %1 = vector.load %arg1[%c0_1, %c0_2] : memref<8x128xf32, #tpu.memory_space<vmem>>, vector<8x128xf32>
    %c0_3 = arith.constant 0 : index
    %c0_4 = arith.constant 0 : index
    %2 = vector.load %arg2[%c0_3, %c0_4] : memref<8x128xf32, #tpu.memory_space<vmem>>, vector<8x128xf32>
    %cst = arith.constant 9.99999974E-6 : f32
    %3 = vector.broadcast %cst : f32 to vector<8x128xf32>
    %4 = arith.addf %2, %3 : vector<8x128xf32>
    %5 = arith.divf %1, %4 : vector<8x128xf32>
    %6 = arith.mulf %0, %5 : vector<8x128xf32>
    %cst_5 = arith.constant 2.500000e-01 : f32
    %7 = vector.broadcast %cst_5 : f32 to vector<8x128xf32>
    %8 = arith.mulf %6, %7 : vector<8x128xf32>
    %c0_6 = arith.constant 0 : index
    %c0_7 = arith.constant 0 : index
    %9 = vector.load %arg3[%c0_6, %c0_7] : memref<8x128xf32, #tpu.memory_space<vmem>>, vector<8x128xf32>
    tpu.vector_store %arg3[%c0_6, %c0_7], %8 {strides = array<i32>} : memref<8x128xf32, #tpu.memory_space<vmem>>, vector<8x128xf32>,
    return
  }
}

module attributes {stable_mosaic.version = 11 : i64} {
  func.func @_mm_div_kernel(%arg0: memref<8x72xbf16, #tpu.memory_space<vmem>>, %arg1: memref<72x128xbf16, #tpu.memory_space<vmem>>, %arg2: memref<8x128xf32, #tpu.memory_space<vmem>>, %arg3: memref<8x128xf32, #tpu.memory_space<vmem>>) attributes {dimension_semantics = [], scalar_prefetch = 0 : i64, scratch_operands = 0 : i64, tpu.core_type = #tpu.core_type<tc>} {
    %c0 = arith.constant 0 : index
    %c0_0 = arith.constant 0 : index
    %0 = vector.load %arg0[%c0, %c0_0] : memref<8x72xbf16, #tpu.memory_space<vmem>>, vector<8x72xbf16>
    %c0_1 = arith.constant 0 : index
    %c0_2 = arith.constant 0 : index
    %1 = vector.load %arg1[%c0_1, %c0_2] : memref<72x128xbf16, #tpu.memory_space<vmem>>, vector<72x128xbf16>
    %cst = arith.constant dense<0.000000e+00> : vector<8x128xf32>
    %2 = tpu.matmul %0, %1, %cst {dimension_numbers = #tpu.dot_dimension_numbers<[1], [0], [0], [1], [0, 0, 1, 1], [], []>} : vector<8x72xbf16>, vector<72x128xbf16>, vector<8x128xf32> -> vector<8x128xf32>
    %c0_3 = arith.constant 0 : index
    %c0_4 = arith.constant 0 : index
    %3 = vector.load %arg2[%c0_3, %c0_4] : memref<8x128xf32, #tpu.memory_space<vmem>>, vector<8x128xf32>
    %cst_5 = arith.constant 9.99999974E-6 : f32
    %4 = vector.broadcast %cst_5 : f32 to vector<8x128xf32>
    %5 = arith.addf %2, %4 : vector<8x128xf32>
    %6 = arith.divf %3, %5 : vector<8x128xf32>
    %c0_6 = arith.constant 0 : index
    %c0_7 = arith.constant 0 : index
    %7 = vector.load %arg3[%c0_6, %c0_7] : memref<8x128xf32, #tpu.memory_space<vmem>>, vector<8x128xf32>
    tpu.vector_store %arg3[%c0_6, %c0_7], %6 {strides = array<i32>} : memref<8x128xf32, #tpu.memory_space<vmem>>, vector<8x128xf32>,
    return
  }
}

module attributes {stable_mosaic.version = 11 : i64} {
  func.func @_mm_mul_kernel(%arg0: memref<8x72xbf16, #tpu.memory_space<vmem>>, %arg1: memref<72x128xbf16, #tpu.memory_space<vmem>>, %arg2: memref<8x128xf32, #tpu.memory_space<vmem>>, %arg3: memref<8x128xf32, #tpu.memory_space<vmem>>) attributes {dimension_semantics = [], scalar_prefetch = 0 : i64, scratch_operands = 0 : i64, tpu.core_type = #tpu.core_type<tc>} {
    %c0 = arith.constant 0 : index
    %c0_0 = arith.constant 0 : index
    %0 = vector.load %arg0[%c0, %c0_0] : memref<8x72xbf16, #tpu.memory_space<vmem>>, vector<8x72xbf16>
    %c0_1 = arith.constant 0 : index
    %c0_2 = arith.constant 0 : index
    %1 = vector.load %arg1[%c0_1, %c0_2] : memref<72x128xbf16, #tpu.memory_space<vmem>>, vector<72x128xbf16>
    %cst = arith.constant dense<0.000000e+00> : vector<8x128xf32>
    %2 = tpu.matmul %0, %1, %cst {dimension_numbers = #tpu.dot_dimension_numbers<[1], [0], [0], [1], [0, 0, 1, 1], [], []>} : vector<8x72xbf16>, vector<72x128xbf16>, vector<8x128xf32> -> vector<8x128xf32>
    %c0_3 = arith.constant 0 : index
    %c0_4 = arith.constant 0 : index
    %3 = vector.load %arg2[%c0_3, %c0_4] : memref<8x128xf32, #tpu.memory_space<vmem>>, vector<8x128xf32>
    %4 = arith.mulf %3, %2 : vector<8x128xf32>
    %c0_5 = arith.constant 0 : index
    %c0_6 = arith.constant 0 : index
    %5 = vector.load %arg3[%c0_5, %c0_6] : memref<8x128xf32, #tpu.memory_space<vmem>>, vector<8x128xf32>
    tpu.vector_store %arg3[%c0_5, %c0_6], %4 {strides = array<i32>} : memref<8x128xf32, #tpu.memory_space<vmem>>, vector<8x128xf32>,
    return
  }
}

module attributes {stable_mosaic.version = 11 : i64} {
  func.func @_pool_lrp_kernel(%arg0: memref<8x512xf32, #tpu.memory_space<vmem>>, %arg1: memref<8x512xf32, #tpu.memory_space<vmem>>, %arg2: memref<8x512xf32, #tpu.memory_space<vmem>>, %arg3: memref<8x512xf32, #tpu.memory_space<vmem>>) attributes {dimension_semantics = [], scalar_prefetch = 0 : i64, scratch_operands = 0 : i64, tpu.core_type = #tpu.core_type<tc>} {
    %c0 = arith.constant 0 : index
    %c0_0 = arith.constant 0 : index
    %0 = vector.load %arg0[%c0, %c0_0] : memref<8x512xf32, #tpu.memory_space<vmem>>, vector<8x512xf32>
    %c0_1 = arith.constant 0 : index
    %c0_2 = arith.constant 0 : index
    %1 = vector.load %arg1[%c0_1, %c0_2] : memref<8x512xf32, #tpu.memory_space<vmem>>, vector<8x512xf32>
    %c0_3 = arith.constant 0 : index
    %c0_4 = arith.constant 0 : index
    %2 = vector.load %arg2[%c0_3, %c0_4] : memref<8x512xf32, #tpu.memory_space<vmem>>, vector<8x512xf32>
    %cst = arith.constant 9.99999974E-6 : f32
    %3 = vector.broadcast %cst : f32 to vector<8x512xf32>
    %4 = arith.addf %2, %3 : vector<8x512xf32>
    %5 = arith.divf %1, %4 : vector<8x512xf32>
    %6 = arith.mulf %0, %5 : vector<8x512xf32>
    %cst_5 = arith.constant 2.500000e-01 : f32
    %7 = vector.broadcast %cst_5 : f32 to vector<8x512xf32>
    %8 = arith.mulf %6, %7 : vector<8x512xf32>
    %c0_6 = arith.constant 0 : index
    %c0_7 = arith.constant 0 : index
    %9 = vector.load %arg3[%c0_6, %c0_7] : memref<8x512xf32, #tpu.memory_space<vmem>>, vector<8x512xf32>
    tpu.vector_store %arg3[%c0_6, %c0_7], %8 {strides = array<i32>} : memref<8x512xf32, #tpu.memory_space<vmem>>, vector<8x512xf32>,
    return
  }
}

module attributes {stable_mosaic.version = 11 : i64} {
  func.func @_mm_div_kernel(%arg0: memref<8x40xbf16, #tpu.memory_space<vmem>>, %arg1: memref<40x512xbf16, #tpu.memory_space<vmem>>, %arg2: memref<8x512xf32, #tpu.memory_space<vmem>>, %arg3: memref<8x512xf32, #tpu.memory_space<vmem>>) attributes {dimension_semantics = [], scalar_prefetch = 0 : i64, scratch_operands = 0 : i64, tpu.core_type = #tpu.core_type<tc>} {
    %c0 = arith.constant 0 : index
    %c0_0 = arith.constant 0 : index
    %0 = vector.load %arg0[%c0, %c0_0] : memref<8x40xbf16, #tpu.memory_space<vmem>>, vector<8x40xbf16>
    %c0_1 = arith.constant 0 : index
    %c0_2 = arith.constant 0 : index
    %1 = vector.load %arg1[%c0_1, %c0_2] : memref<40x512xbf16, #tpu.memory_space<vmem>>, vector<40x512xbf16>
    %cst = arith.constant dense<0.000000e+00> : vector<8x512xf32>
    %2 = tpu.matmul %0, %1, %cst {dimension_numbers = #tpu.dot_dimension_numbers<[1], [0], [0], [1], [0, 0, 1, 1], [], []>} : vector<8x40xbf16>, vector<40x512xbf16>, vector<8x512xf32> -> vector<8x512xf32>
    %c0_3 = arith.constant 0 : index
    %c0_4 = arith.constant 0 : index
    %3 = vector.load %arg2[%c0_3, %c0_4] : memref<8x512xf32, #tpu.memory_space<vmem>>, vector<8x512xf32>
    %cst_5 = arith.constant 9.99999974E-6 : f32
    %4 = vector.broadcast %cst_5 : f32 to vector<8x512xf32>
    %5 = arith.addf %2, %4 : vector<8x512xf32>
    %6 = arith.divf %3, %5 : vector<8x512xf32>
    %c0_6 = arith.constant 0 : index
    %c0_7 = arith.constant 0 : index
    %7 = vector.load %arg3[%c0_6, %c0_7] : memref<8x512xf32, #tpu.memory_space<vmem>>, vector<8x512xf32>
    tpu.vector_store %arg3[%c0_6, %c0_7], %6 {strides = array<i32>} : memref<8x512xf32, #tpu.memory_space<vmem>>, vector<8x512xf32>,
    return
  }
}

module attributes {stable_mosaic.version = 11 : i64} {
  func.func @_mm_mul_kernel(%arg0: memref<4x72xbf16, #tpu.memory_space<vmem>>, %arg1: memref<72x512xbf16, #tpu.memory_space<vmem>>, %arg2: memref<4x512xf32, #tpu.memory_space<vmem>>, %arg3: memref<4x512xf32, #tpu.memory_space<vmem>>) attributes {dimension_semantics = [], scalar_prefetch = 0 : i64, scratch_operands = 0 : i64, tpu.core_type = #tpu.core_type<tc>} {
    %c0 = arith.constant 0 : index
    %c0_0 = arith.constant 0 : index
    %0 = vector.load %arg0[%c0, %c0_0] : memref<4x72xbf16, #tpu.memory_space<vmem>>, vector<4x72xbf16>
    %c0_1 = arith.constant 0 : index
    %c0_2 = arith.constant 0 : index
    %1 = vector.load %arg1[%c0_1, %c0_2] : memref<72x512xbf16, #tpu.memory_space<vmem>>, vector<72x512xbf16>
    %cst = arith.constant dense<0.000000e+00> : vector<4x512xf32>
    %2 = tpu.matmul %0, %1, %cst {dimension_numbers = #tpu.dot_dimension_numbers<[1], [0], [0], [1], [0, 0, 1, 1], [], []>} : vector<4x72xbf16>, vector<72x512xbf16>, vector<4x512xf32> -> vector<4x512xf32>
    %c0_3 = arith.constant 0 : index
    %c0_4 = arith.constant 0 : index
    %3 = vector.load %arg2[%c0_3, %c0_4] : memref<4x512xf32, #tpu.memory_space<vmem>>, vector<4x512xf32>
    %4 = arith.mulf %3, %2 : vector<4x512xf32>
    %c0_5 = arith.constant 0 : index
    %c0_6 = arith.constant 0 : index
    %5 = vector.load %arg3[%c0_5, %c0_6] : memref<4x512xf32, #tpu.memory_space<vmem>>, vector<4x512xf32>
    tpu.vector_store %arg3[%c0_5, %c0_6], %4 {strides = array<i32>} : memref<4x512xf32, #tpu.memory_space<vmem>>, vector<4x512xf32>,
    return
  }
}

</mosaic_0001>

<llo_original>
// kernel: lrp_model_forward.16
$region0: #{lrp_model_forward.16}
  #allocation0 [shape = 'u32[]', space=smem, size = 0x4, offset = 0x4, fixed_abs, tag = 'smem constant byte address 0x4 - core index']
  #allocation1 [shape = 'u32[144,128]{1,0:T(1,128)}', space=vmem, size = 0x12000, scoped, tag = 'internal scratch']
  %s0 = inlined_call_operand.vmem [shape: bf16[8,40], index: 0, kind: input, shape index: {}]
  %s1 = inlined_call_operand.vmem [shape: bf16[40,512], index: 1, kind: input, shape index: {}]
  %s2 = inlined_call_operand.vmem [shape: f32[8,1], index: 2, kind: input, shape index: {}]
  %s3 = inlined_call_operand.vmem [shape: f32[8,512], index: 3, kind: output, shape index: {}]
  %s4 = sld [smem:[#allocation0]]
  $region22: #{lrp_model_forward.16} parent=0
    _
  %s6 = ssub.s32 1, %s4
  %s7 = scalar_select 0, %s6, %s4
  // Predicated region
  $region2: #{lrp_model_forward.16} parent=0 // pred_check
    _
  $region3: #{lrp_model_forward.16} parent=0 // pred_check_branch
    %9 = sbr.rel (0) target = $region5
  $region4: #{lrp_model_forward.16} parent=0 // pred_region
    _
  $region5: #{lrp_model_forward.16} parent=0 // pred_fallthru
    _
  // Predicated region
  $region6: #{lrp_model_forward.16} parent=0 // pred_check
    _
  $region7: #{lrp_model_forward.16} parent=0 // pred_check_branch
    %11 = sbr.rel (0) target = $region9
  $region8: #{lrp_model_forward.16} parent=0 // pred_region
    _
  $region9: #{lrp_model_forward.16} parent=0 // pred_fallthru
    _
  // Predicated region
  $region10: #{lrp_model_forward.16} parent=0 // pred_check
    _
  $region11: #{lrp_model_forward.16} parent=0 // pred_check_branch
    %13 = sbr.rel (0) target = $region13
  $region12: #{lrp_model_forward.16} parent=0 // pred_region
    _
  $region13: #{lrp_model_forward.16} parent=0 // pred_fallthru
    _
  %v15 = vld [vmem:[%s0] sm:$0xf]
  %v16 = vld [vmem:[%s1] sm:$0xff]
  %v17 = vld [vmem:[%s1 + $0x8] sm:$0xff]
  %v18 = vld [vmem:[%s1 + $0x10] sm:$0xff]
  %v19 = vld [vmem:[%s1 + $0x18] sm:$0xff]
  %v20 = vld [vmem:[%s1 + $0x20] sm:$0xff]
  %v21 = vld [vmem:[%s1 + $0x28] sm:$0xff]
  %v22 = vld [vmem:[%s1 + $0x30] sm:$0xff]
  %v23 = vld [vmem:[%s1 + $0x38] sm:$0xff]
  %v24 = vld [vmem:[%s1 + $0x40] sm:$0xff]
  %v25 = vld [vmem:[%s1 + $0x48] sm:$0xff]
  %v26 = vld [vmem:[%s2] sm:$0xff]
  %28 = vset.pattern.permute.xlu0 0
  %29 = vperm.xlu0 %28, %v26
  %v30 = vpop.permute.xlu0 %29
  %v42 = vunpack.c.l.b16 %v16
  %v43 = vunpack.c.h.b16 %v16
  %v44 = vunpack.c.l.b16 %v17
  %v45 = vunpack.c.h.b16 %v17
  %v46 = vunpack.c.l.b16 %v18
  %v47 = vunpack.c.h.b16 %v18
  %v48 = vunpack.c.l.b16 %v19
  %v49 = vunpack.c.h.b16 %v19
  %v50 = vunpack.c.l.b16 %v20
  %v51 = vunpack.c.h.b16 %v20
  %v52 = vunpack.c.l.b16 %v21
  %v53 = vunpack.c.h.b16 %v21
  %v54 = vunpack.c.l.b16 %v22
  %v55 = vunpack.c.h.b16 %v22
  %v56 = vunpack.c.l.b16 %v23
  %v57 = vunpack.c.h.b16 %v23
  %v58 = vunpack.c.l.b16 %v24
  %v59 = vunpack.c.h.b16 %v24
  %v60 = vunpack.c.l.b16 %v25
  %v61 = vunpack.c.h.b16 %v25
  %v62 = vpack.c.b16 %v46, %v42
  %v63 = vpack.c.b16 %v47, %v43
  %v64 = vpack.c.b16 %v48, %v44
  %v65 = vpack.c.b16 %v49, %v45
  %v66 = vpack.c.b16 %v54, %v50
  %v67 = vpack.c.b16 %v55, %v51
  %v68 = vpack.c.b16 %v56, %v52
  %v69 = vpack.c.b16 %v57, %v53
  %v70 = vpack.c.b16 %v58, %v58
  %v71 = vpack.c.b16 %v59, %v59
  %v72 = vpack.c.b16 %v60, %v60
  %v73 = vpack.c.b16 %v61, %v61
  %vm82 = vcmask 326656
  %v84 = vsel %vm82, %v15, 0
  %vm86 = vcmask 1043456
  %v88 = vsel %vm86, %v70, 0
  %v91 = vsel %vm86, %v71, 0
  %v94 = vsel %vm86, %v72, 0
  %v97 = vsel %vm86, %v73, 0
  %99 = vmatprep.subr.bf16.mxu0 0
  %100 = vmatpush1.bf16.msra.mxu0 0
  %101 = vmatprep.subr.bf16.mxu0 0
  %102 = vmatpush1.bf16.msra.mxu0 0
  %103 = vmatprep.subr.bf16.mxu0 0
  %104 = vmatpush1.bf16.msra.mxu0 0
  %105 = vmatprep.subr.bf16.mxu0 0
  %106 = vmatpush1.bf16.msra.mxu0 0
  %107 = vmatprep.subr.bf16.mxu0 0
  %108 = vmatpush1.bf16.msra.mxu0 0
  %109 = vmatprep.subr.bf16.mxu0 %v91
  %110 = vmatpush1.bf16.msra.mxu0 %v88
  %111 = vmatprep.subr.bf16.mxu0 %v67
  %112 = vmatpush1.bf16.msra.mxu0 %v66
  %113 = vmatprep.subr.bf16.mxu0 %v63
  %114 = vmatpush1.bf16.msra.mxu0 %v62
  %115 = vmatprep.subr.bf16.mxu0 0
  %116 = vmatpush2.bf16.msra.mxu0 0
  %117 = vmatprep.subr.bf16.mxu0 0
  %118 = vmatpush2.bf16.msra.mxu0 0
  %119 = vmatprep.subr.bf16.mxu0 0
  %120 = vmatpush2.bf16.msra.mxu0 0
  %121 = vmatprep.subr.bf16.mxu0 0
  %122 = vmatpush2.bf16.msra.mxu0 0
  %123 = vmatprep.subr.bf16.mxu0 0
  %124 = vmatpush2.bf16.msra.mxu0 0
  %125 = vmatprep.subr.bf16.mxu0 0
  %126 = vmatpush2.bf16.msra.mxu0 0
  %127 = vmatprep.subr.bf16.mxu0 0
  %128 = vmatpush2.bf16.msra.mxu0 0
  %129 = vmatprep.subr.bf16.mxu0 0
  %130 = vmatpush2.bf16.msra.mxu0 0
  %131 = vmatprep.mubr.bf16.mxu0 0
  %132 = vmatmul.mubr.bf16.gmra.mxu0 %v84
  %v133 = vpop.f32.mrf.mxu0
  %v134 = vadd.f32 %v30, %v133
  %v135 = vpop.f32.mrf.mxu0
  %v136 = vadd.f32 %v30, %v135
  %v137 = vpop.f32.mrf.mxu0
  %v138 = vpop.f32.mrf.mxu0
  %139 = vdwg.mxu0
  %140 = vmatprep.subr.bf16.mxu0 0
  %141 = vmatpush1.bf16.msra.mxu0 0
  %142 = vmatprep.subr.bf16.mxu0 0
  %143 = vmatpush1.bf16.msra.mxu0 0
  %144 = vmatprep.subr.bf16.mxu0 0
  %145 = vmatpush1.bf16.msra.mxu0 0
  %146 = vmatprep.subr.bf16.mxu0 0
  %147 = vmatpush1.bf16.msra.mxu0 0
  %148 = vmatprep.subr.bf16.mxu0 0
  %149 = vmatpush1.bf16.msra.mxu0 0
  %150 = vmatprep.subr.bf16.mxu0 %v97
  %151 = vmatpush1.bf16.msra.mxu0 %v94
  %152 = vmatprep.subr.bf16.mxu0 %v69
  %153 = vmatpush1.bf16.msra.mxu0 %v68
  %154 = vmatprep.subr.bf16.mxu0 %v65
  %155 = vmatpush1.bf16.msra.mxu0 %v64
  %156 = vmatprep.subr.bf16.mxu0 0
  %157 = vmatpush2.bf16.msra.mxu0 0
  %158 = vmatprep.subr.bf16.mxu0 0
  %159 = vmatpush2.bf16.msra.mxu0 0
  %160 = vmatprep.subr.bf16.mxu0 0
  %161 = vmatpush2.bf16.msra.mxu0 0
  %162 = vmatprep.subr.bf16.mxu0 0
  %163 = vmatpush2.bf16.msra.mxu0 0
  %164 = vmatprep.subr.bf16.mxu0 0
  %165 = vmatpush2.bf16.msra.mxu0 0
  %166 = vmatprep.subr.bf16.mxu0 0
  %167 = vmatpush2.bf16.msra.mxu0 0
  %168 = vmatprep.subr.bf16.mxu0 0
  %169 = vmatpush2.bf16.msra.mxu0 0
  %170 = vmatprep.subr.bf16.mxu0 0
  %171 = vmatpush2.bf16.msra.mxu0 0
  %172 = vmatprep.mubr.bf16.mxu0 0
  %173 = vmatmul.mubr.bf16.gmra.mxu0 %v84
  %v174 = vpop.f32.mrf.mxu0
  %v175 = vadd.f32 %v30, %v174
  %v176 = vpop.f32.mrf.mxu0
  %v177 = vadd.f32 %v30, %v176
  %v178 = vpop.f32.mrf.mxu0
  %v179 = vpop.f32.mrf.mxu0
  %180 = vdwg.mxu0
  %v181 = vmax.f32 %v134, 0.0
  %v182 = vmax.f32 %v136, 0.0
  %v183 = vmax.f32 %v175, 0.0
  %v184 = vmax.f32 %v177, 0.0
  %185 = vst [vmem:[%s3] sm:$0xff] %v181
  %186 = vst [vmem:[%s3 + $0x8] sm:$0xff] %v182
  %187 = vst [vmem:[%s3 + $0x10] sm:$0xff] %v183
  %188 = vst [vmem:[%s3 + $0x18] sm:$0xff] %v184
  // Predicated region
  $region14: #{lrp_model_forward.16} parent=0 // pred_check
    _
  $region15: #{lrp_model_forward.16} parent=0 // pred_check_branch
    %190 = sbr.rel (0) target = $region17
  $region16: #{lrp_model_forward.16} parent=0 // pred_region
    _
  $region17: #{lrp_model_forward.16} parent=0 // pred_fallthru
    _
  // Predicated region
  $region18: #{lrp_model_forward.16} parent=0 // pred_check
    _
  $region19: #{lrp_model_forward.16} parent=0 // pred_check_branch
    %192 = sbr.rel (0) target = $region21
  $region20: #{lrp_model_forward.16} parent=0 // pred_region
    _
  $region21: #{lrp_model_forward.16} parent=0 // pred_fallthru
    _

// kernel: lrp_model_forward.17
$region0: #{lrp_model_forward.17}
  #allocation0 [shape = 'u32[]', space=smem, size = 0x4, offset = 0x4, fixed_abs, tag = 'smem constant byte address 0x4 - core index']
  #allocation1 [shape = 'u32[144,128]{1,0:T(1,128)}', space=vmem, size = 0x12000, scoped, tag = 'internal scratch']
  %s0 = inlined_call_operand.vmem [shape: bf16[8,72], index: 0, kind: input, shape index: {}]
  %s1 = inlined_call_operand.vmem [shape: bf16[72,128], index: 1, kind: input, shape index: {}]
  %s2 = inlined_call_operand.vmem [shape: f32[8,1], index: 2, kind: input, shape index: {}]
  %s3 = inlined_call_operand.vmem [shape: f32[8,128], index: 3, kind: output, shape index: {}]
  %s4 = sld [smem:[#allocation0]]
  $region22: #{lrp_model_forward.17} parent=0
    _
  %s6 = ssub.s32 1, %s4
  %s7 = scalar_select 0, %s6, %s4
  // Predicated region
  $region2: #{lrp_model_forward.17} parent=0 // pred_check
    _
  $region3: #{lrp_model_forward.17} parent=0 // pred_check_branch
    %9 = sbr.rel (0) target = $region5
  $region4: #{lrp_model_forward.17} parent=0 // pred_region
    _
  $region5: #{lrp_model_forward.17} parent=0 // pred_fallthru
    _
  // Predicated region
  $region6: #{lrp_model_forward.17} parent=0 // pred_check
    _
  $region7: #{lrp_model_forward.17} parent=0 // pred_check_branch
    %11 = sbr.rel (0) target = $region9
  $region8: #{lrp_model_forward.17} parent=0 // pred_region
    _
  $region9: #{lrp_model_forward.17} parent=0 // pred_fallthru
    _
  // Predicated region
  $region10: #{lrp_model_forward.17} parent=0 // pred_check
    _
  $region11: #{lrp_model_forward.17} parent=0 // pred_check_branch
    %13 = sbr.rel (0) target = $region13
  $region12: #{lrp_model_forward.17} parent=0 // pred_region
    _
  $region13: #{lrp_model_forward.17} parent=0 // pred_fallthru
    _
  %v15 = vld [vmem:[%s0] sm:$0xf]
  %v16 = vld [vmem:[%s1] sm:$0xf]
  %v17 = vld [vmem:[%s1 + $0x4] sm:$0xf]
  %v18 = vld [vmem:[%s1 + $0x8] sm:$0xf]
  %v19 = vld [vmem:[%s1 + $0xc] sm:$0xf]
  %v20 = vld [vmem:[%s1 + $0x10] sm:$0xf]
  %v21 = vld [vmem:[%s1 + $0x14] sm:$0xf]
  %v22 = vld [vmem:[%s1 + $0x18] sm:$0xf]
  %v23 = vld [vmem:[%s1 + $0x1c] sm:$0xf]
  %v24 = vld [vmem:[%s1 + $0x20] sm:$0xf]
  %v25 = vld [vmem:[%s2] sm:$0xff]
  %27 = vset.pattern.permute.xlu0 0
  %28 = vperm.xlu0 %27, %v25
  %v29 = vpop.permute.xlu0 %28
  %v40 = vunpack.c.l.b16 %v16
  %v41 = vunpack.c.l.b16 %v17
  %v42 = vunpack.c.l.b16 %v18
  %v43 = vunpack.c.l.b16 %v19
  %v44 = vunpack.c.l.b16 %v20
  %v45 = vunpack.c.l.b16 %v21
  %v46 = vunpack.c.l.b16 %v22
  %v47 = vunpack.c.l.b16 %v23
  %v48 = vunpack.c.l.b16 %v24
  %v49 = vpack.c.b16 %v41, %v40
  %v50 = vpack.c.b16 %v43, %v42
  %v51 = vpack.c.b16 %v45, %v44
  %v52 = vpack.c.b16 %v47, %v46
  %v53 = vpack.c.b16 %v48, %v48
  %vm58 = vcmask 588800
  %v60 = vsel %vm58, %v15, 0
  %vm62 = vcmask 1043456
  %v64 = vsel %vm62, %v53, 0
  %66 = vmatprep.subr.bf16.mxu0 0
  %67 = vmatpush1.bf16.msra.mxu0 0
  %68 = vmatprep.subr.bf16.mxu0 0
  %69 = vmatpush1.bf16.msra.mxu0 0
  %70 = vmatprep.subr.bf16.mxu0 0
  %71 = vmatpush1.bf16.msra.mxu0 0
  %72 = vmatprep.subr.bf16.mxu0 0
  %73 = vmatpush1.bf16.msra.mxu0 %v64
  %74 = vmatprep.subr.bf16.mxu0 0
  %75 = vmatpush1.bf16.msra.mxu0 %v52
  %76 = vmatprep.subr.bf16.mxu0 0
  %77 = vmatpush1.bf16.msra.mxu0 %v51
  %78 = vmatprep.subr.bf16.mxu0 0
  %79 = vmatpush1.bf16.msra.mxu0 %v50
  %80 = vmatprep.subr.bf16.mxu0 0
  %81 = vmatpush1.bf16.msra.mxu0 %v49
  %82 = vmatprep.subr.bf16.mxu0 0
  %83 = vmatpush2.bf16.msra.mxu0 0
  %84 = vmatprep.subr.bf16.mxu0 0
  %85 = vmatpush2.bf16.msra.mxu0 0
  %86 = vmatprep.subr.bf16.mxu0 0
  %87 = vmatpush2.bf16.msra.mxu0 0
  %88 = vmatprep.subr.bf16.mxu0 0
  %89 = vmatpush2.bf16.msra.mxu0 0
  %90 = vmatprep.subr.bf16.mxu0 0
  %91 = vmatpush2.bf16.msra.mxu0 0
  %92 = vmatprep.subr.bf16.mxu0 0
  %93 = vmatpush2.bf16.msra.mxu0 0
  %94 = vmatprep.subr.bf16.mxu0 0
  %95 = vmatpush2.bf16.msra.mxu0 0
  %96 = vmatprep.subr.bf16.mxu0 0
  %97 = vmatpush2.bf16.msra.mxu0 0
  %98 = vmatprep.mubr.bf16.mxu0 0
  %99 = vmatmul.mubr.bf16.gmra.mxu0 %v60
  %v100 = vpop.f32.mrf.mxu0
  %v101 = vadd.f32 %v29, %v100
  %v102 = vpop.f32.mrf.mxu0
  %v103 = vpop.f32.mrf.mxu0
  %v104 = vpop.f32.mrf.mxu0
  %105 = vdwg.mxu0
  %v106 = vmax.f32 %v101, 0.0
  %107 = vst [vmem:[%s3] sm:$0xff] %v106
  // Predicated region
  $region14: #{lrp_model_forward.17} parent=0 // pred_check
    _
  $region15: #{lrp_model_forward.17} parent=0 // pred_check_branch
    %109 = sbr.rel (0) target = $region17
  $region16: #{lrp_model_forward.17} parent=0 // pred_region
    _
  $region17: #{lrp_model_forward.17} parent=0 // pred_fallthru
    _
  // Predicated region
  $region18: #{lrp_model_forward.17} parent=0 // pred_check
    _
  $region19: #{lrp_model_forward.17} parent=0 // pred_check_branch
    %111 = sbr.rel (0) target = $region21
  $region20: #{lrp_model_forward.17} parent=0 // pred_region
    _
  $region21: #{lrp_model_forward.17} parent=0 // pred_fallthru
    _

// kernel: lrp_model_forward.18
$region0: #{lrp_model_forward.18}
  #allocation0 [shape = 'u32[]', space=smem, size = 0x4, offset = 0x4, fixed_abs, tag = 'smem constant byte address 0x4 - core index']
  #allocation1 [shape = 'u32[144,128]{1,0:T(1,128)}', space=vmem, size = 0x12000, scoped, tag = 'internal scratch']
  %s0 = inlined_call_operand.vmem [shape: bf16[8,128], index: 0, kind: input, shape index: {}]
  %s1 = inlined_call_operand.vmem [shape: bf16[128,128], index: 1, kind: input, shape index: {}]
  %s2 = inlined_call_operand.vmem [shape: f32[1,128], index: 2, kind: input, shape index: {}]
  %s3 = inlined_call_operand.vmem [shape: f32[8,128], index: 3, kind: output, shape index: {}]
  %s4 = sld [smem:[#allocation0]]
  $region22: #{lrp_model_forward.18} parent=0
    _
  %s6 = ssub.s32 1, %s4
  %s7 = scalar_select 0, %s6, %s4
  // Predicated region
  $region2: #{lrp_model_forward.18} parent=0 // pred_check
    _
  $region3: #{lrp_model_forward.18} parent=0 // pred_check_branch
    %9 = sbr.rel (0) target = $region5
  $region4: #{lrp_model_forward.18} parent=0 // pred_region
    _
  $region5: #{lrp_model_forward.18} parent=0 // pred_fallthru
    _
  // Predicated region
  $region6: #{lrp_model_forward.18} parent=0 // pred_check
    _
  $region7: #{lrp_model_forward.18} parent=0 // pred_check_branch
    %11 = sbr.rel (0) target = $region9
  $region8: #{lrp_model_forward.18} parent=0 // pred_region
    _
  $region9: #{lrp_model_forward.18} parent=0 // pred_fallthru
    _
  // Predicated region
  $region10: #{lrp_model_forward.18} parent=0 // pred_check
    _
  $region11: #{lrp_model_forward.18} parent=0 // pred_check_branch
    %13 = sbr.rel (0) target = $region13
  $region12: #{lrp_model_forward.18} parent=0 // pred_region
    _
  $region13: #{lrp_model_forward.18} parent=0 // pred_fallthru
    _
  %v15 = vld [vmem:[%s0] sm:$0xf]
  %v16 = vld [vmem:[%s1] sm:$0xf]
  %v17 = vld [vmem:[%s1 + $0x4] sm:$0xf]
  %v18 = vld [vmem:[%s1 + $0x8] sm:$0xf]
  %v19 = vld [vmem:[%s1 + $0xc] sm:$0xf]
  %v20 = vld [vmem:[%s1 + $0x10] sm:$0xf]
  %v21 = vld [vmem:[%s1 + $0x14] sm:$0xf]
  %v22 = vld [vmem:[%s1 + $0x18] sm:$0xf]
  %v23 = vld [vmem:[%s1 + $0x1c] sm:$0xf]
  %v24 = vld [vmem:[%s1 + $0x20] sm:$0xf]
  %v25 = vld [vmem:[%s1 + $0x24] sm:$0xf]
  %v26 = vld [vmem:[%s1 + $0x28] sm:$0xf]
  %v27 = vld [vmem:[%s1 + $0x2c] sm:$0xf]
  %v28 = vld [vmem:[%s1 + $0x30] sm:$0xf]
  %v29 = vld [vmem:[%s1 + $0x34] sm:$0xf]
  %v30 = vld [vmem:[%s1 + $0x38] sm:$0xf]
  %v31 = vld [vmem:[%s1 + $0x3c] sm:$0xf]
  %v32 = vld [vmem:[%s2] sm:$0x1]
  %v34 = vlaneseq
  %v35 = vshrl.u32 %v34, 7
  %v36 = vsub.s32 0, %v35
  %v37 = vrot.slane %v32, %v36
  %v55 = vunpack.c.l.b16 %v16
  %v56 = vunpack.c.l.b16 %v17
  %v57 = vunpack.c.l.b16 %v18
  %v58 = vunpack.c.l.b16 %v19
  %v59 = vunpack.c.l.b16 %v20
  %v60 = vunpack.c.l.b16 %v21
  %v61 = vunpack.c.l.b16 %v22
  %v62 = vunpack.c.l.b16 %v23
  %v63 = vunpack.c.l.b16 %v24
  %v64 = vunpack.c.l.b16 %v25
  %v65 = vunpack.c.l.b16 %v26
  %v66 = vunpack.c.l.b16 %v27
  %v67 = vunpack.c.l.b16 %v28
  %v68 = vunpack.c.l.b16 %v29
  %v69 = vunpack.c.l.b16 %v30
  %v70 = vunpack.c.l.b16 %v31
  %v71 = vpack.c.b16 %v56, %v55
  %v72 = vpack.c.b16 %v58, %v57
  %v73 = vpack.c.b16 %v60, %v59
  %v74 = vpack.c.b16 %v62, %v61
  %v75 = vpack.c.b16 %v64, %v63
  %v76 = vpack.c.b16 %v66, %v65
  %v77 = vpack.c.b16 %v68, %v67
  %v78 = vpack.c.b16 %v70, %v69
  %87 = vmatprep.subr.bf16.mxu0 0
  %88 = vmatpush1.bf16.msra.mxu0 %v78
  %89 = vmatprep.subr.bf16.mxu0 0
  %90 = vmatpush1.bf16.msra.mxu0 %v77
  %91 = vmatprep.subr.bf16.mxu0 0
  %92 = vmatpush1.bf16.msra.mxu0 %v76
  %93 = vmatprep.subr.bf16.mxu0 0
  %94 = vmatpush1.bf16.msra.mxu0 %v75
  %95 = vmatprep.subr.bf16.mxu0 0
  %96 = vmatpush1.bf16.msra.mxu0 %v74
  %97 = vmatprep.subr.bf16.mxu0 0
  %98 = vmatpush1.bf16.msra.mxu0 %v73
  %99 = vmatprep.subr.bf16.mxu0 0
  %100 = vmatpush1.bf16.msra.mxu0 %v72
  %101 = vmatprep.subr.bf16.mxu0 0
  %102 = vmatpush1.bf16.msra.mxu0 %v71
  %103 = vmatprep.subr.bf16.mxu0 0
  %104 = vmatpush2.bf16.msra.mxu0 0
  %105 = vmatprep.subr.bf16.mxu0 0
  %106 = vmatpush2.bf16.msra.mxu0 0
  %107 = vmatprep.subr.bf16.mxu0 0
  %108 = vmatpush2.bf16.msra.mxu0 0
  %109 = vmatprep.subr.bf16.mxu0 0
  %110 = vmatpush2.bf16.msra.mxu0 0
  %111 = vmatprep.subr.bf16.mxu0 0
  %112 = vmatpush2.bf16.msra.mxu0 0
  %113 = vmatprep.subr.bf16.mxu0 0
  %114 = vmatpush2.bf16.msra.mxu0 0
  %115 = vmatprep.subr.bf16.mxu0 0
  %116 = vmatpush2.bf16.msra.mxu0 0
  %117 = vmatprep.subr.bf16.mxu0 0
  %118 = vmatpush2.bf16.msra.mxu0 0
  %119 = vmatprep.mubr.bf16.mxu0 0
  %120 = vmatmul.mubr.bf16.gmra.mxu0 %v15
  %v121 = vpop.f32.mrf.mxu0
  %v122 = vadd.f32 %v37, %v121
  %v123 = vpop.f32.mrf.mxu0
  %v124 = vpop.f32.mrf.mxu0
  %v125 = vpop.f32.mrf.mxu0
  %126 = vdwg.mxu0
  %v127 = vmax.f32 %v122, 0.0
  %128 = vst [vmem:[%s3] sm:$0xff] %v127
  // Predicated region
  $region14: #{lrp_model_forward.18} parent=0 // pred_check
    _
  $region15: #{lrp_model_forward.18} parent=0 // pred_check_branch
    %130 = sbr.rel (0) target = $region17
  $region16: #{lrp_model_forward.18} parent=0 // pred_region
    _
  $region17: #{lrp_model_forward.18} parent=0 // pred_fallthru
    _
  // Predicated region
  $region18: #{lrp_model_forward.18} parent=0 // pred_check
    _
  $region19: #{lrp_model_forward.18} parent=0 // pred_check_branch
    %132 = sbr.rel (0) target = $region21
  $region20: #{lrp_model_forward.18} parent=0 // pred_region
    _
  $region21: #{lrp_model_forward.18} parent=0 // pred_fallthru
    _

// kernel: lrp_model_forward.20
$region0: #{lrp_model_forward.20}
  #allocation0 [shape = 'u32[]', space=smem, size = 0x4, offset = 0x4, fixed_abs, tag = 'smem constant byte address 0x4 - core index']
  #allocation1 [shape = 'u32[144,128]{1,0:T(1,128)}', space=vmem, size = 0x12000, scoped, tag = 'internal scratch']
  %s0 = inlined_call_operand.vmem [shape: f32[8,128], index: 0, kind: input, shape index: {}]
  %s1 = inlined_call_operand.vmem [shape: f32[8,128], index: 1, kind: output, shape index: {}]
  %s2 = sld [smem:[#allocation0]]
  $region14: #{lrp_model_forward.20} parent=0
    _
  %s4 = ssub.s32 1, %s2
  %s5 = scalar_select 0, %s4, %s2
  // Predicated region
  $region2: #{lrp_model_forward.20} parent=0 // pred_check
    _
  $region3: #{lrp_model_forward.20} parent=0 // pred_check_branch
    %7 = sbr.rel (0) target = $region5
  $region4: #{lrp_model_forward.20} parent=0 // pred_region
    _
  $region5: #{lrp_model_forward.20} parent=0 // pred_fallthru
    _
  %v8 = vld [vmem:[%s0] sm:$0xff]
  %v9 = vlaneseq
  %v10 = vand.u32 %v9, 127
  %vm11 = vcmp.lt.s32.totalorder %v10, 10
  %v12 = vsel %vm11, %v8, -1e+30
  %13 = vmax.xlane.f32.xlu0 %v12
  %v14 = vpop.xlane.xlu0 %13
  %v15 = vsub.f32 %v12, %v14
  %v16 = vmul.f32 %v15, 1.442695
  %v17 = vpow.pop %v16
  %18 = vadd.xlane.f32.xlu0 %v17
  %v19 = vpop.xlane.xlu0 %18
  %v20 = vrcp.pop %v19
  %v21 = vmul.f32 %v17, %v20
  %22 = vst [vmem:[%s1] sm:$0xff] %v21
  // Predicated region
  $region6: #{lrp_model_forward.20} parent=0 // pred_check
    _
  $region7: #{lrp_model_forward.20} parent=0 // pred_check_branch
    %24 = sbr.rel (0) target = $region9
  $region8: #{lrp_model_forward.20} parent=0 // pred_region
    _
  $region9: #{lrp_model_forward.20} parent=0 // pred_fallthru
    _
  // Predicated region
  $region10: #{lrp_model_forward.20} parent=0 // pred_check
    _
  $region11: #{lrp_model_forward.20} parent=0 // pred_check_branch
    %26 = sbr.rel (0) target = $region13
  $region12: #{lrp_model_forward.20} parent=0 // pred_region
    _
  $region13: #{lrp_model_forward.20} parent=0 // pred_fallthru
    _

// kernel: lrp_model_forward.21
$region0: #{lrp_model_forward.21}
  #allocation0 [shape = 'u32[]', space=smem, size = 0x4, offset = 0x4, fixed_abs, tag = 'smem constant byte address 0x4 - core index']
  #allocation1 [shape = 'u32[144,128]{1,0:T(1,128)}', space=vmem, size = 0x12000, scoped, tag = 'internal scratch']
  %s0 = inlined_call_operand.vmem [shape: bf16[8,128], index: 0, kind: input, shape index: {}]
  %s1 = inlined_call_operand.vmem [shape: bf16[128,128], index: 1, kind: input, shape index: {}]
  %s2 = inlined_call_operand.vmem [shape: f32[8,128], index: 2, kind: input, shape index: {}]
  %s3 = inlined_call_operand.vmem [shape: f32[8,128], index: 3, kind: output, shape index: {}]
  %s4 = sld [smem:[#allocation0]]
  $region22: #{lrp_model_forward.21} parent=0
    _
  %s6 = ssub.s32 1, %s4
  %s7 = scalar_select 0, %s6, %s4
  // Predicated region
  $region2: #{lrp_model_forward.21} parent=0 // pred_check
    _
  $region3: #{lrp_model_forward.21} parent=0 // pred_check_branch
    %9 = sbr.rel (0) target = $region5
  $region4: #{lrp_model_forward.21} parent=0 // pred_region
    _
  $region5: #{lrp_model_forward.21} parent=0 // pred_fallthru
    _
  // Predicated region
  $region6: #{lrp_model_forward.21} parent=0 // pred_check
    _
  $region7: #{lrp_model_forward.21} parent=0 // pred_check_branch
    %11 = sbr.rel (0) target = $region9
  $region8: #{lrp_model_forward.21} parent=0 // pred_region
    _
  $region9: #{lrp_model_forward.21} parent=0 // pred_fallthru
    _
  // Predicated region
  $region10: #{lrp_model_forward.21} parent=0 // pred_check
    _
  $region11: #{lrp_model_forward.21} parent=0 // pred_check_branch
    %13 = sbr.rel (0) target = $region13
  $region12: #{lrp_model_forward.21} parent=0 // pred_region
    _
  $region13: #{lrp_model_forward.21} parent=0 // pred_fallthru
    _
  %v15 = vld [vmem:[%s0] sm:$0xf]
  %v16 = vld [vmem:[%s1] sm:$0xf]
  %v17 = vld [vmem:[%s1 + $0x4] sm:$0xf]
  %v18 = vld [vmem:[%s1 + $0x8] sm:$0xf]
  %v19 = vld [vmem:[%s1 + $0xc] sm:$0xf]
  %v20 = vld [vmem:[%s1 + $0x10] sm:$0xf]
  %v21 = vld [vmem:[%s1 + $0x14] sm:$0xf]
  %v22 = vld [vmem:[%s1 + $0x18] sm:$0xf]
  %v23 = vld [vmem:[%s1 + $0x1c] sm:$0xf]
  %v24 = vld [vmem:[%s1 + $0x20] sm:$0xf]
  %v25 = vld [vmem:[%s1 + $0x24] sm:$0xf]
  %v26 = vld [vmem:[%s1 + $0x28] sm:$0xf]
  %v27 = vld [vmem:[%s1 + $0x2c] sm:$0xf]
  %v28 = vld [vmem:[%s1 + $0x30] sm:$0xf]
  %v29 = vld [vmem:[%s1 + $0x34] sm:$0xf]
  %v30 = vld [vmem:[%s1 + $0x38] sm:$0xf]
  %v31 = vld [vmem:[%s1 + $0x3c] sm:$0xf]
  %v32 = vld [vmem:[%s2] sm:$0xff]
  %v49 = vunpack.c.l.b16 %v16
  %v50 = vunpack.c.l.b16 %v17
  %v51 = vunpack.c.l.b16 %v18
  %v52 = vunpack.c.l.b16 %v19
  %v53 = vunpack.c.l.b16 %v20
  %v54 = vunpack.c.l.b16 %v21
  %v55 = vunpack.c.l.b16 %v22
  %v56 = vunpack.c.l.b16 %v23
  %v57 = vunpack.c.l.b16 %v24
  %v58 = vunpack.c.l.b16 %v25
  %v59 = vunpack.c.l.b16 %v26
  %v60 = vunpack.c.l.b16 %v27
  %v61 = vunpack.c.l.b16 %v28
  %v62 = vunpack.c.l.b16 %v29
  %v63 = vunpack.c.l.b16 %v30
  %v64 = vunpack.c.l.b16 %v31
  %v65 = vpack.c.b16 %v50, %v49
  %v66 = vpack.c.b16 %v52, %v51
  %v67 = vpack.c.b16 %v54, %v53
  %v68 = vpack.c.b16 %v56, %v55
  %v69 = vpack.c.b16 %v58, %v57
  %v70 = vpack.c.b16 %v60, %v59
  %v71 = vpack.c.b16 %v62, %v61
  %v72 = vpack.c.b16 %v64, %v63
  %81 = vmatprep.subr.bf16.mxu0 0
  %82 = vmatpush1.bf16.msra.mxu0 %v72
  %83 = vmatprep.subr.bf16.mxu0 0
  %84 = vmatpush1.bf16.msra.mxu0 %v71
  %85 = vmatprep.subr.bf16.mxu0 0
  %86 = vmatpush1.bf16.msra.mxu0 %v70
  %87 = vmatprep.subr.bf16.mxu0 0
  %88 = vmatpush1.bf16.msra.mxu0 %v69
  %89 = vmatprep.subr.bf16.mxu0 0
  %90 = vmatpush1.bf16.msra.mxu0 %v68
  %91 = vmatprep.subr.bf16.mxu0 0
  %92 = vmatpush1.bf16.msra.mxu0 %v67
  %93 = vmatprep.subr.bf16.mxu0 0
  %94 = vmatpush1.bf16.msra.mxu0 %v66
  %95 = vmatprep.subr.bf16.mxu0 0
  %96 = vmatpush1.bf16.msra.mxu0 %v65
  %97 = vmatprep.subr.bf16.mxu0 0
  %98 = vmatpush2.bf16.msra.mxu0 0
  %99 = vmatprep.subr.bf16.mxu0 0
  %100 = vmatpush2.bf16.msra.mxu0 0
  %101 = vmatprep.subr.bf16.mxu0 0
  %102 = vmatpush2.bf16.msra.mxu0 0
  %103 = vmatprep.subr.bf16.mxu0 0
  %104 = vmatpush2.bf16.msra.mxu0 0
  %105 = vmatprep.subr.bf16.mxu0 0
  %106 = vmatpush2.bf16.msra.mxu0 0
  %107 = vmatprep.subr.bf16.mxu0 0
  %108 = vmatpush2.bf16.msra.mxu0 0
  %109 = vmatprep.subr.bf16.mxu0 0
  %110 = vmatpush2.bf16.msra.mxu0 0
  %111 = vmatprep.subr.bf16.mxu0 0
  %112 = vmatpush2.bf16.msra.mxu0 0
  %113 = vmatprep.mubr.bf16.mxu0 0
  %114 = vmatmul.mubr.bf16.gmra.mxu0 %v15
  %v115 = vpop.f32.mrf.mxu0
  %v116 = vadd.f32 1e-05, %v115
  %v117 = vpop.f32.mrf.mxu0
  %v118 = vpop.f32.mrf.mxu0
  %v119 = vpop.f32.mrf.mxu0
  %120 = vdwg.mxu0
  %v121 = vrcp.pop %v116
  %v122 = vmul.f32 %v32, %v121
  %123 = vst [vmem:[%s3] sm:$0xff] %v122
  // Predicated region
  $region14: #{lrp_model_forward.21} parent=0 // pred_check
    _
  $region15: #{lrp_model_forward.21} parent=0 // pred_check_branch
    %125 = sbr.rel (0) target = $region17
  $region16: #{lrp_model_forward.21} parent=0 // pred_region
    _
  $region17: #{lrp_model_forward.21} parent=0 // pred_fallthru
    _
  // Predicated region
  $region18: #{lrp_model_forward.21} parent=0 // pred_check
    _
  $region19: #{lrp_model_forward.21} parent=0 // pred_check_branch
    %127 = sbr.rel (0) target = $region21
  $region20: #{lrp_model_forward.21} parent=0 // pred_region
    _
  $region21: #{lrp_model_forward.21} parent=0 // pred_fallthru
    _

// kernel: lrp_model_forward.22
$region0: #{lrp_model_forward.22}
  #allocation0 [shape = 'u32[]', space=smem, size = 0x4, offset = 0x4, fixed_abs, tag = 'smem constant byte address 0x4 - core index']
  #allocation1 [shape = 'u32[144,128]{1,0:T(1,128)}', space=vmem, size = 0x12000, scoped, tag = 'internal scratch']
  %s0 = inlined_call_operand.vmem [shape: bf16[8,128], index: 0, kind: input, shape index: {}]
  %s1 = inlined_call_operand.vmem [shape: bf16[128,128], index: 1, kind: input, shape index: {}]
  %s2 = inlined_call_operand.vmem [shape: f32[8,128], index: 2, kind: input, shape index: {}]
  %s3 = inlined_call_operand.vmem [shape: f32[8,128], index: 3, kind: output, shape index: {}]
  %s4 = sld [smem:[#allocation0]]
  $region22: #{lrp_model_forward.22} parent=0
    _
  %s6 = ssub.s32 1, %s4
  %s7 = scalar_select 0, %s6, %s4
  // Predicated region
  $region2: #{lrp_model_forward.22} parent=0 // pred_check
    _
  $region3: #{lrp_model_forward.22} parent=0 // pred_check_branch
    %9 = sbr.rel (0) target = $region5
  $region4: #{lrp_model_forward.22} parent=0 // pred_region
    _
  $region5: #{lrp_model_forward.22} parent=0 // pred_fallthru
    _
  // Predicated region
  $region6: #{lrp_model_forward.22} parent=0 // pred_check
    _
  $region7: #{lrp_model_forward.22} parent=0 // pred_check_branch
    %11 = sbr.rel (0) target = $region9
  $region8: #{lrp_model_forward.22} parent=0 // pred_region
    _
  $region9: #{lrp_model_forward.22} parent=0 // pred_fallthru
    _
  // Predicated region
  $region10: #{lrp_model_forward.22} parent=0 // pred_check
    _
  $region11: #{lrp_model_forward.22} parent=0 // pred_check_branch
    %13 = sbr.rel (0) target = $region13
  $region12: #{lrp_model_forward.22} parent=0 // pred_region
    _
  $region13: #{lrp_model_forward.22} parent=0 // pred_fallthru
    _
  %v15 = vld [vmem:[%s0] sm:$0xf]
  %v16 = vld [vmem:[%s1] sm:$0xf]
  %v17 = vld [vmem:[%s1 + $0x4] sm:$0xf]
  %v18 = vld [vmem:[%s1 + $0x8] sm:$0xf]
  %v19 = vld [vmem:[%s1 + $0xc] sm:$0xf]
  %v20 = vld [vmem:[%s1 + $0x10] sm:$0xf]
  %v21 = vld [vmem:[%s1 + $0x14] sm:$0xf]
  %v22 = vld [vmem:[%s1 + $0x18] sm:$0xf]
  %v23 = vld [vmem:[%s1 + $0x1c] sm:$0xf]
  %v24 = vld [vmem:[%s1 + $0x20] sm:$0xf]
  %v25 = vld [vmem:[%s1 + $0x24] sm:$0xf]
  %v26 = vld [vmem:[%s1 + $0x28] sm:$0xf]
  %v27 = vld [vmem:[%s1 + $0x2c] sm:$0xf]
  %v28 = vld [vmem:[%s1 + $0x30] sm:$0xf]
  %v29 = vld [vmem:[%s1 + $0x34] sm:$0xf]
  %v30 = vld [vmem:[%s1 + $0x38] sm:$0xf]
  %v31 = vld [vmem:[%s1 + $0x3c] sm:$0xf]
  %v48 = vunpack.c.l.b16 %v16
  %v49 = vunpack.c.l.b16 %v17
  %v50 = vunpack.c.l.b16 %v18
  %v51 = vunpack.c.l.b16 %v19
  %v52 = vunpack.c.l.b16 %v20
  %v53 = vunpack.c.l.b16 %v21
  %v54 = vunpack.c.l.b16 %v22
  %v55 = vunpack.c.l.b16 %v23
  %v56 = vunpack.c.l.b16 %v24
  %v57 = vunpack.c.l.b16 %v25
  %v58 = vunpack.c.l.b16 %v26
  %v59 = vunpack.c.l.b16 %v27
  %v60 = vunpack.c.l.b16 %v28
  %v61 = vunpack.c.l.b16 %v29
  %v62 = vunpack.c.l.b16 %v30
  %v63 = vunpack.c.l.b16 %v31
  %v64 = vpack.c.b16 %v49, %v48
  %v65 = vpack.c.b16 %v51, %v50
  %v66 = vpack.c.b16 %v53, %v52
  %v67 = vpack.c.b16 %v55, %v54
  %v68 = vpack.c.b16 %v57, %v56
  %v69 = vpack.c.b16 %v59, %v58
  %v70 = vpack.c.b16 %v61, %v60
  %v71 = vpack.c.b16 %v63, %v62
  %80 = vmatprep.subr.bf16.mxu0 0
  %81 = vmatpush1.bf16.msra.mxu0 %v71
  %82 = vmatprep.subr.bf16.mxu0 0
  %83 = vmatpush1.bf16.msra.mxu0 %v70
  %84 = vmatprep.subr.bf16.mxu0 0
  %85 = vmatpush1.bf16.msra.mxu0 %v69
  %86 = vmatprep.subr.bf16.mxu0 0
  %87 = vmatpush1.bf16.msra.mxu0 %v68
  %88 = vmatprep.subr.bf16.mxu0 0
  %89 = vmatpush1.bf16.msra.mxu0 %v67
  %90 = vmatprep.subr.bf16.mxu0 0
  %91 = vmatpush1.bf16.msra.mxu0 %v66
  %92 = vmatprep.subr.bf16.mxu0 0
  %93 = vmatpush1.bf16.msra.mxu0 %v65
  %94 = vmatprep.subr.bf16.mxu0 0
  %95 = vmatpush1.bf16.msra.mxu0 %v64
  %96 = vmatprep.subr.bf16.mxu0 0
  %97 = vmatpush2.bf16.msra.mxu0 0
  %98 = vmatprep.subr.bf16.mxu0 0
  %99 = vmatpush2.bf16.msra.mxu0 0
  %100 = vmatprep.subr.bf16.mxu0 0
  %101 = vmatpush2.bf16.msra.mxu0 0
  %102 = vmatprep.subr.bf16.mxu0 0
  %103 = vmatpush2.bf16.msra.mxu0 0
  %104 = vmatprep.subr.bf16.mxu0 0
  %105 = vmatpush2.bf16.msra.mxu0 0
  %106 = vmatprep.subr.bf16.mxu0 0
  %107 = vmatpush2.bf16.msra.mxu0 0
  %108 = vmatprep.subr.bf16.mxu0 0
  %109 = vmatpush2.bf16.msra.mxu0 0
  %110 = vmatprep.subr.bf16.mxu0 0
  %111 = vmatpush2.bf16.msra.mxu0 0
  %112 = vmatprep.mubr.bf16.mxu0 0
  %113 = vmatmul.mubr.bf16.gmra.mxu0 %v15
  %v114 = vpop.f32.mrf.mxu0
  %v115 = vadd.f32 0.0, %v114
  %v116 = vpop.f32.mrf.mxu0
  %v117 = vpop.f32.mrf.mxu0
  %v118 = vpop.f32.mrf.mxu0
  %119 = vdwg.mxu0
  %v120 = vld [vmem:[%s2] sm:$0xff]
  %v121 = vmul.f32 %v120, %v115
  %122 = vst [vmem:[%s3] sm:$0xff] %v121
  // Predicated region
  $region14: #{lrp_model_forward.22} parent=0 // pred_check
    _
  $region15: #{lrp_model_forward.22} parent=0 // pred_check_branch
    %124 = sbr.rel (0) target = $region17
  $region16: #{lrp_model_forward.22} parent=0 // pred_region
    _
  $region17: #{lrp_model_forward.22} parent=0 // pred_fallthru
    _
  // Predicated region
  $region18: #{lrp_model_forward.22} parent=0 // pred_check
    _
  $region19: #{lrp_model_forward.22} parent=0 // pred_check_branch
    %126 = sbr.rel (0) target = $region21
  $region20: #{lrp_model_forward.22} parent=0 // pred_region
    _
  $region21: #{lrp_model_forward.22} parent=0 // pred_fallthru
    _

// kernel: lrp_model_forward.19
$region0: #{lrp_model_forward.19}
  #allocation0 [shape = 'u32[]', space=smem, size = 0x4, offset = 0x4, fixed_abs, tag = 'smem constant byte address 0x4 - core index']
  #allocation1 [shape = 'u32[144,128]{1,0:T(1,128)}', space=vmem, size = 0x12000, scoped, tag = 'internal scratch']
  %s0 = inlined_call_operand.vmem [shape: bf16[8,128], index: 0, kind: input, shape index: {}]
  %s1 = inlined_call_operand.vmem [shape: bf16[128,128], index: 1, kind: input, shape index: {}]
  %s2 = inlined_call_operand.vmem [shape: f32[1,128], index: 2, kind: input, shape index: {}]
  %s3 = inlined_call_operand.vmem [shape: f32[8,128], index: 3, kind: output, shape index: {}]
  %s4 = sld [smem:[#allocation0]]
  $region22: #{lrp_model_forward.19} parent=0
    _
  %s6 = ssub.s32 1, %s4
  %s7 = scalar_select 0, %s6, %s4
  // Predicated region
  $region2: #{lrp_model_forward.19} parent=0 // pred_check
    _
  $region3: #{lrp_model_forward.19} parent=0 // pred_check_branch
    %9 = sbr.rel (0) target = $region5
  $region4: #{lrp_model_forward.19} parent=0 // pred_region
    _
  $region5: #{lrp_model_forward.19} parent=0 // pred_fallthru
    _
  // Predicated region
  $region6: #{lrp_model_forward.19} parent=0 // pred_check
    _
  $region7: #{lrp_model_forward.19} parent=0 // pred_check_branch
    %11 = sbr.rel (0) target = $region9
  $region8: #{lrp_model_forward.19} parent=0 // pred_region
    _
  $region9: #{lrp_model_forward.19} parent=0 // pred_fallthru
    _
  // Predicated region
  $region10: #{lrp_model_forward.19} parent=0 // pred_check
    _
  $region11: #{lrp_model_forward.19} parent=0 // pred_check_branch
    %13 = sbr.rel (0) target = $region13
  $region12: #{lrp_model_forward.19} parent=0 // pred_region
    _
  $region13: #{lrp_model_forward.19} parent=0 // pred_fallthru
    _
  %v15 = vld [vmem:[%s0] sm:$0xf]
  %v16 = vld [vmem:[%s1] sm:$0xf]
  %v17 = vld [vmem:[%s1 + $0x4] sm:$0xf]
  %v18 = vld [vmem:[%s1 + $0x8] sm:$0xf]
  %v19 = vld [vmem:[%s1 + $0xc] sm:$0xf]
  %v20 = vld [vmem:[%s1 + $0x10] sm:$0xf]
  %v21 = vld [vmem:[%s1 + $0x14] sm:$0xf]
  %v22 = vld [vmem:[%s1 + $0x18] sm:$0xf]
  %v23 = vld [vmem:[%s1 + $0x1c] sm:$0xf]
  %v24 = vld [vmem:[%s1 + $0x20] sm:$0xf]
  %v25 = vld [vmem:[%s1 + $0x24] sm:$0xf]
  %v26 = vld [vmem:[%s1 + $0x28] sm:$0xf]
  %v27 = vld [vmem:[%s1 + $0x2c] sm:$0xf]
  %v28 = vld [vmem:[%s1 + $0x30] sm:$0xf]
  %v29 = vld [vmem:[%s1 + $0x34] sm:$0xf]
  %v30 = vld [vmem:[%s1 + $0x38] sm:$0xf]
  %v31 = vld [vmem:[%s1 + $0x3c] sm:$0xf]
  %v32 = vld [vmem:[%s2] sm:$0x1]
  %v34 = vlaneseq
  %v35 = vshrl.u32 %v34, 7
  %v36 = vsub.s32 0, %v35
  %v37 = vrot.slane %v32, %v36
  %v55 = vunpack.c.l.b16 %v16
  %v56 = vunpack.c.l.b16 %v17
  %v57 = vunpack.c.l.b16 %v18
  %v58 = vunpack.c.l.b16 %v19
  %v59 = vunpack.c.l.b16 %v20
  %v60 = vunpack.c.l.b16 %v21
  %v61 = vunpack.c.l.b16 %v22
  %v62 = vunpack.c.l.b16 %v23
  %v63 = vunpack.c.l.b16 %v24
  %v64 = vunpack.c.l.b16 %v25
  %v65 = vunpack.c.l.b16 %v26
  %v66 = vunpack.c.l.b16 %v27
  %v67 = vunpack.c.l.b16 %v28
  %v68 = vunpack.c.l.b16 %v29
  %v69 = vunpack.c.l.b16 %v30
  %v70 = vunpack.c.l.b16 %v31
  %v71 = vpack.c.b16 %v56, %v55
  %v72 = vpack.c.b16 %v58, %v57
  %v73 = vpack.c.b16 %v60, %v59
  %v74 = vpack.c.b16 %v62, %v61
  %v75 = vpack.c.b16 %v64, %v63
  %v76 = vpack.c.b16 %v66, %v65
  %v77 = vpack.c.b16 %v68, %v67
  %v78 = vpack.c.b16 %v70, %v69
  %87 = vmatprep.subr.bf16.mxu0 0
  %88 = vmatpush1.bf16.msra.mxu0 %v78
  %89 = vmatprep.subr.bf16.mxu0 0
  %90 = vmatpush1.bf16.msra.mxu0 %v77
  %91 = vmatprep.subr.bf16.mxu0 0
  %92 = vmatpush1.bf16.msra.mxu0 %v76
  %93 = vmatprep.subr.bf16.mxu0 0
  %94 = vmatpush1.bf16.msra.mxu0 %v75
  %95 = vmatprep.subr.bf16.mxu0 0
  %96 = vmatpush1.bf16.msra.mxu0 %v74
  %97 = vmatprep.subr.bf16.mxu0 0
  %98 = vmatpush1.bf16.msra.mxu0 %v73
  %99 = vmatprep.subr.bf16.mxu0 0
  %100 = vmatpush1.bf16.msra.mxu0 %v72
  %101 = vmatprep.subr.bf16.mxu0 0
  %102 = vmatpush1.bf16.msra.mxu0 %v71
  %103 = vmatprep.subr.bf16.mxu0 0
  %104 = vmatpush2.bf16.msra.mxu0 0
  %105 = vmatprep.subr.bf16.mxu0 0
  %106 = vmatpush2.bf16.msra.mxu0 0
  %107 = vmatprep.subr.bf16.mxu0 0
  %108 = vmatpush2.bf16.msra.mxu0 0
  %109 = vmatprep.subr.bf16.mxu0 0
  %110 = vmatpush2.bf16.msra.mxu0 0
  %111 = vmatprep.subr.bf16.mxu0 0
  %112 = vmatpush2.bf16.msra.mxu0 0
  %113 = vmatprep.subr.bf16.mxu0 0
  %114 = vmatpush2.bf16.msra.mxu0 0
  %115 = vmatprep.subr.bf16.mxu0 0
  %116 = vmatpush2.bf16.msra.mxu0 0
  %117 = vmatprep.subr.bf16.mxu0 0
  %118 = vmatpush2.bf16.msra.mxu0 0
  %119 = vmatprep.mubr.bf16.mxu0 0
  %120 = vmatmul.mubr.bf16.gmra.mxu0 %v15
  %v121 = vpop.f32.mrf.mxu0
  %v122 = vadd.f32 %v37, %v121
  %v123 = vpop.f32.mrf.mxu0
  %v124 = vpop.f32.mrf.mxu0
  %v125 = vpop.f32.mrf.mxu0
  %126 = vdwg.mxu0
  %127 = vst [vmem:[%s3] sm:$0xff] %v122
  // Predicated region
  $region14: #{lrp_model_forward.19} parent=0 // pred_check
    _
  $region15: #{lrp_model_forward.19} parent=0 // pred_check_branch
    %129 = sbr.rel (0) target = $region17
  $region16: #{lrp_model_forward.19} parent=0 // pred_region
    _
  $region17: #{lrp_model_forward.19} parent=0 // pred_fallthru
    _
  // Predicated region
  $region18: #{lrp_model_forward.19} parent=0 // pred_check
    _
  $region19: #{lrp_model_forward.19} parent=0 // pred_check_branch
    %131 = sbr.rel (0) target = $region21
  $region20: #{lrp_model_forward.19} parent=0 // pred_region
    _
  $region21: #{lrp_model_forward.19} parent=0 // pred_fallthru
    _

// kernel: lrp_model_forward.25
$region0: #{lrp_model_forward.25}
  #allocation0 [shape = 'u32[]', space=smem, size = 0x4, offset = 0x4, fixed_abs, tag = 'smem constant byte address 0x4 - core index']
  #allocation1 [shape = 'u32[144,128]{1,0:T(1,128)}', space=vmem, size = 0x12000, scoped, tag = 'internal scratch']
  %s0 = inlined_call_operand.vmem [shape: f32[8,32], index: 0, kind: input, shape index: {}]
  %s1 = inlined_call_operand.vmem [shape: f32[8,32], index: 1, kind: input, shape index: {}]
  %s2 = inlined_call_operand.vmem [shape: f32[8,32], index: 2, kind: input, shape index: {}]
  %s3 = inlined_call_operand.vmem [shape: f32[8,32], index: 3, kind: output, shape index: {}]
  %s4 = sld [smem:[#allocation0]]
  $region22: #{lrp_model_forward.25} parent=0
    _
  %s6 = ssub.s32 1, %s4
  %s7 = scalar_select 0, %s6, %s4
  // Predicated region
  $region2: #{lrp_model_forward.25} parent=0 // pred_check
    _
  $region3: #{lrp_model_forward.25} parent=0 // pred_check_branch
    %9 = sbr.rel (0) target = $region5
  $region4: #{lrp_model_forward.25} parent=0 // pred_region
    _
  $region5: #{lrp_model_forward.25} parent=0 // pred_fallthru
    _
  // Predicated region
  $region6: #{lrp_model_forward.25} parent=0 // pred_check
    _
  $region7: #{lrp_model_forward.25} parent=0 // pred_check_branch
    %11 = sbr.rel (0) target = $region9
  $region8: #{lrp_model_forward.25} parent=0 // pred_region
    _
  $region9: #{lrp_model_forward.25} parent=0 // pred_fallthru
    _
  // Predicated region
  $region10: #{lrp_model_forward.25} parent=0 // pred_check
    _
  $region11: #{lrp_model_forward.25} parent=0 // pred_check_branch
    %13 = sbr.rel (0) target = $region13
  $region12: #{lrp_model_forward.25} parent=0 // pred_region
    _
  $region13: #{lrp_model_forward.25} parent=0 // pred_fallthru
    _
  %v14 = vld [vmem:[%s0] sm:$0xff]
  %v15 = vld [vmem:[%s1] sm:$0xff]
  %v16 = vld [vmem:[%s2] sm:$0xff]
  %v17 = vadd.f32 %v16, 1e-05
  %v18 = vrcp.pop %v17
  %v19 = vmul.f32 %v15, %v18
  %v20 = vmul.f32 %v14, %v19
  %v21 = vmul.f32 %v20, 0.25
  %vm22 = vcmask 261120
  %23 = vst.msk [vmem:[%s3] sm:$0xff] %vm22, %v21
  // Predicated region
  $region14: #{lrp_model_forward.25} parent=0 // pred_check
    _
  $region15: #{lrp_model_forward.25} parent=0 // pred_check_branch
    %25 = sbr.rel (0) target = $region17
  $region16: #{lrp_model_forward.25} parent=0 // pred_region
    _
  $region17: #{lrp_model_forward.25} parent=0 // pred_fallthru
    _
  // Predicated region
  $region18: #{lrp_model_forward.25} parent=0 // pred_check
    _
  $region19: #{lrp_model_forward.25} parent=0 // pred_check_branch
    %27 = sbr.rel (0) target = $region21
  $region20: #{lrp_model_forward.25} parent=0 // pred_region
    _
  $region21: #{lrp_model_forward.25} parent=0 // pred_fallthru
    _

// kernel: lrp_model_forward.26
$region0: #{lrp_model_forward.26}
  #allocation0 [shape = 'u32[]', space=smem, size = 0x4, offset = 0x4, fixed_abs, tag = 'smem constant byte address 0x4 - core index']
  #allocation1 [shape = 'u32[144,128]{1,0:T(1,128)}', space=vmem, size = 0x12000, scoped, tag = 'internal scratch']
  %s0 = inlined_call_operand.vmem [shape: f32[8,128], index: 0, kind: input, shape index: {}]
  %s1 = inlined_call_operand.vmem [shape: f32[8,128], index: 1, kind: input, shape index: {}]
  %s2 = inlined_call_operand.vmem [shape: f32[8,128], index: 2, kind: input, shape index: {}]
  %s3 = inlined_call_operand.vmem [shape: f32[8,128], index: 3, kind: output, shape index: {}]
  %s4 = sld [smem:[#allocation0]]
  $region22: #{lrp_model_forward.26} parent=0
    _
  %s6 = ssub.s32 1, %s4
  %s7 = scalar_select 0, %s6, %s4
  // Predicated region
  $region2: #{lrp_model_forward.26} parent=0 // pred_check
    _
  $region3: #{lrp_model_forward.26} parent=0 // pred_check_branch
    %9 = sbr.rel (0) target = $region5
  $region4: #{lrp_model_forward.26} parent=0 // pred_region
    _
  $region5: #{lrp_model_forward.26} parent=0 // pred_fallthru
    _
  // Predicated region
  $region6: #{lrp_model_forward.26} parent=0 // pred_check
    _
  $region7: #{lrp_model_forward.26} parent=0 // pred_check_branch
    %11 = sbr.rel (0) target = $region9
  $region8: #{lrp_model_forward.26} parent=0 // pred_region
    _
  $region9: #{lrp_model_forward.26} parent=0 // pred_fallthru
    _
  // Predicated region
  $region10: #{lrp_model_forward.26} parent=0 // pred_check
    _
  $region11: #{lrp_model_forward.26} parent=0 // pred_check_branch
    %13 = sbr.rel (0) target = $region13
  $region12: #{lrp_model_forward.26} parent=0 // pred_region
    _
  $region13: #{lrp_model_forward.26} parent=0 // pred_fallthru
    _
  %v14 = vld [vmem:[%s0] sm:$0xff]
  %v15 = vld [vmem:[%s1] sm:$0xff]
  %v16 = vld [vmem:[%s2] sm:$0xff]
  %v17 = vadd.f32 %v16, 1e-05
  %v18 = vrcp.pop %v17
  %v19 = vmul.f32 %v15, %v18
  %v20 = vmul.f32 %v14, %v19
  %v21 = vmul.f32 %v20, 0.25
  %22 = vst [vmem:[%s3] sm:$0xff] %v21
  // Predicated region
  $region14: #{lrp_model_forward.26} parent=0 // pred_check
    _
  $region15: #{lrp_model_forward.26} parent=0 // pred_check_branch
    %24 = sbr.rel (0) target = $region17
  $region16: #{lrp_model_forward.26} parent=0 // pred_region
    _
  $region17: #{lrp_model_forward.26} parent=0 // pred_fallthru
    _
  // Predicated region
  $region18: #{lrp_model_forward.26} parent=0 // pred_check
    _
  $region19: #{lrp_model_forward.26} parent=0 // pred_check_branch
    %26 = sbr.rel (0) target = $region21
  $region20: #{lrp_model_forward.26} parent=0 // pred_region
    _
  $region21: #{lrp_model_forward.26} parent=0 // pred_fallthru
    _

// kernel: lrp_model_forward.27
$region0: #{lrp_model_forward.27}
  #allocation0 [shape = 'u32[]', space=smem, size = 0x4, offset = 0x4, fixed_abs, tag = 'smem constant byte address 0x4 - core index']
  #allocation1 [shape = 'u32[144,128]{1,0:T(1,128)}', space=vmem, size = 0x12000, scoped, tag = 'internal scratch']
  %s0 = inlined_call_operand.vmem [shape: bf16[8,72], index: 0, kind: input, shape index: {}]
  %s1 = inlined_call_operand.vmem [shape: bf16[72,128], index: 1, kind: input, shape index: {}]
  %s2 = inlined_call_operand.vmem [shape: f32[8,128], index: 2, kind: input, shape index: {}]
  %s3 = inlined_call_operand.vmem [shape: f32[8,128], index: 3, kind: output, shape index: {}]
  %s4 = sld [smem:[#allocation0]]
  $region22: #{lrp_model_forward.27} parent=0
    _
  %s6 = ssub.s32 1, %s4
  %s7 = scalar_select 0, %s6, %s4
  // Predicated region
  $region2: #{lrp_model_forward.27} parent=0 // pred_check
    _
  $region3: #{lrp_model_forward.27} parent=0 // pred_check_branch
    %9 = sbr.rel (0) target = $region5
  $region4: #{lrp_model_forward.27} parent=0 // pred_region
    _
  $region5: #{lrp_model_forward.27} parent=0 // pred_fallthru
    _
  // Predicated region
  $region6: #{lrp_model_forward.27} parent=0 // pred_check
    _
  $region7: #{lrp_model_forward.27} parent=0 // pred_check_branch
    %11 = sbr.rel (0) target = $region9
  $region8: #{lrp_model_forward.27} parent=0 // pred_region
    _
  $region9: #{lrp_model_forward.27} parent=0 // pred_fallthru
    _
  // Predicated region
  $region10: #{lrp_model_forward.27} parent=0 // pred_check
    _
  $region11: #{lrp_model_forward.27} parent=0 // pred_check_branch
    %13 = sbr.rel (0) target = $region13
  $region12: #{lrp_model_forward.27} parent=0 // pred_region
    _
  $region13: #{lrp_model_forward.27} parent=0 // pred_fallthru
    _
  %v15 = vld [vmem:[%s0] sm:$0xf]
  %v16 = vld [vmem:[%s1] sm:$0xf]
  %v17 = vld [vmem:[%s1 + $0x4] sm:$0xf]
  %v18 = vld [vmem:[%s1 + $0x8] sm:$0xf]
  %v19 = vld [vmem:[%s1 + $0xc] sm:$0xf]
  %v20 = vld [vmem:[%s1 + $0x10] sm:$0xf]
  %v21 = vld [vmem:[%s1 + $0x14] sm:$0xf]
  %v22 = vld [vmem:[%s1 + $0x18] sm:$0xf]
  %v23 = vld [vmem:[%s1 + $0x1c] sm:$0xf]
  %v24 = vld [vmem:[%s1 + $0x20] sm:$0xf]
  %v25 = vld [vmem:[%s2] sm:$0xff]
  %v35 = vunpack.c.l.b16 %v16
  %v36 = vunpack.c.l.b16 %v17
  %v37 = vunpack.c.l.b16 %v18
  %v38 = vunpack.c.l.b16 %v19
  %v39 = vunpack.c.l.b16 %v20
  %v40 = vunpack.c.l.b16 %v21
  %v41 = vunpack.c.l.b16 %v22
  %v42 = vunpack.c.l.b16 %v23
  %v43 = vunpack.c.l.b16 %v24
  %v44 = vpack.c.b16 %v36, %v35
  %v45 = vpack.c.b16 %v38, %v37
  %v46 = vpack.c.b16 %v40, %v39
  %v47 = vpack.c.b16 %v42, %v41
  %v48 = vpack.c.b16 %v43, %v43
  %vm53 = vcmask 588800
  %v55 = vsel %vm53, %v15, 0
  %vm57 = vcmask 1043456
  %v59 = vsel %vm57, %v48, 0
  %61 = vmatprep.subr.bf16.mxu0 0
  %62 = vmatpush1.bf16.msra.mxu0 0
  %63 = vmatprep.subr.bf16.mxu0 0
  %64 = vmatpush1.bf16.msra.mxu0 0
  %65 = vmatprep.subr.bf16.mxu0 0
  %66 = vmatpush1.bf16.msra.mxu0 0
  %67 = vmatprep.subr.bf16.mxu0 0
  %68 = vmatpush1.bf16.msra.mxu0 %v59
  %69 = vmatprep.subr.bf16.mxu0 0
  %70 = vmatpush1.bf16.msra.mxu0 %v47
  %71 = vmatprep.subr.bf16.mxu0 0
  %72 = vmatpush1.bf16.msra.mxu0 %v46
  %73 = vmatprep.subr.bf16.mxu0 0
  %74 = vmatpush1.bf16.msra.mxu0 %v45
  %75 = vmatprep.subr.bf16.mxu0 0
  %76 = vmatpush1.bf16.msra.mxu0 %v44
  %77 = vmatprep.subr.bf16.mxu0 0
  %78 = vmatpush2.bf16.msra.mxu0 0
  %79 = vmatprep.subr.bf16.mxu0 0
  %80 = vmatpush2.bf16.msra.mxu0 0
  %81 = vmatprep.subr.bf16.mxu0 0
  %82 = vmatpush2.bf16.msra.mxu0 0
  %83 = vmatprep.subr.bf16.mxu0 0
  %84 = vmatpush2.bf16.msra.mxu0 0
  %85 = vmatprep.subr.bf16.mxu0 0
  %86 = vmatpush2.bf16.msra.mxu0 0
  %87 = vmatprep.subr.bf16.mxu0 0
  %88 = vmatpush2.bf16.msra.mxu0 0
  %89 = vmatprep.subr.bf16.mxu0 0
  %90 = vmatpush2.bf16.msra.mxu0 0
  %91 = vmatprep.subr.bf16.mxu0 0
  %92 = vmatpush2.bf16.msra.mxu0 0
  %93 = vmatprep.mubr.bf16.mxu0 0
  %94 = vmatmul.mubr.bf16.gmra.mxu0 %v55
  %v95 = vpop.f32.mrf.mxu0
  %v96 = vadd.f32 1e-05, %v95
  %v97 = vpop.f32.mrf.mxu0
  %v98 = vpop.f32.mrf.mxu0
  %v99 = vpop.f32.mrf.mxu0
  %100 = vdwg.mxu0
  %v101 = vrcp.pop %v96
  %v102 = vmul.f32 %v25, %v101
  %103 = vst [vmem:[%s3] sm:$0xff] %v102
  // Predicated region
  $region14: #{lrp_model_forward.27} parent=0 // pred_check
    _
  $region15: #{lrp_model_forward.27} parent=0 // pred_check_branch
    %105 = sbr.rel (0) target = $region17
  $region16: #{lrp_model_forward.27} parent=0 // pred_region
    _
  $region17: #{lrp_model_forward.27} parent=0 // pred_fallthru
    _
  // Predicated region
  $region18: #{lrp_model_forward.27} parent=0 // pred_check
    _
  $region19: #{lrp_model_forward.27} parent=0 // pred_check_branch
    %107 = sbr.rel (0) target = $region21
  $region20: #{lrp_model_forward.27} parent=0 // pred_region
    _
  $region21: #{lrp_model_forward.27} parent=0 // pred_fallthru
    _

// kernel: lrp_model_forward.28
$region0: #{lrp_model_forward.28}
  #allocation0 [shape = 'u32[]', space=smem, size = 0x4, offset = 0x4, fixed_abs, tag = 'smem constant byte address 0x4 - core index']
  #allocation1 [shape = 'u32[144,128]{1,0:T(1,128)}', space=vmem, size = 0x12000, scoped, tag = 'internal scratch']
  %s0 = inlined_call_operand.vmem [shape: bf16[8,72], index: 0, kind: input, shape index: {}]
  %s1 = inlined_call_operand.vmem [shape: bf16[72,128], index: 1, kind: input, shape index: {}]
  %s2 = inlined_call_operand.vmem [shape: f32[8,128], index: 2, kind: input, shape index: {}]
  %s3 = inlined_call_operand.vmem [shape: f32[8,128], index: 3, kind: output, shape index: {}]
  %s4 = sld [smem:[#allocation0]]
  $region22: #{lrp_model_forward.28} parent=0
    _
  %s6 = ssub.s32 1, %s4
  %s7 = scalar_select 0, %s6, %s4
  // Predicated region
  $region2: #{lrp_model_forward.28} parent=0 // pred_check
    _
  $region3: #{lrp_model_forward.28} parent=0 // pred_check_branch
    %9 = sbr.rel (0) target = $region5
  $region4: #{lrp_model_forward.28} parent=0 // pred_region
    _
  $region5: #{lrp_model_forward.28} parent=0 // pred_fallthru
    _
  // Predicated region
  $region6: #{lrp_model_forward.28} parent=0 // pred_check
    _
  $region7: #{lrp_model_forward.28} parent=0 // pred_check_branch
    %11 = sbr.rel (0) target = $region9
  $region8: #{lrp_model_forward.28} parent=0 // pred_region
    _
  $region9: #{lrp_model_forward.28} parent=0 // pred_fallthru
    _
  // Predicated region
  $region10: #{lrp_model_forward.28} parent=0 // pred_check
    _
  $region11: #{lrp_model_forward.28} parent=0 // pred_check_branch
    %13 = sbr.rel (0) target = $region13
  $region12: #{lrp_model_forward.28} parent=0 // pred_region
    _
  $region13: #{lrp_model_forward.28} parent=0 // pred_fallthru
    _
  %v15 = vld [vmem:[%s0] sm:$0xf]
  %v16 = vld [vmem:[%s1] sm:$0xf]
  %v17 = vld [vmem:[%s1 + $0x4] sm:$0xf]
  %v18 = vld [vmem:[%s1 + $0x8] sm:$0xf]
  %v19 = vld [vmem:[%s1 + $0xc] sm:$0xf]
  %v20 = vld [vmem:[%s1 + $0x10] sm:$0xf]
  %v21 = vld [vmem:[%s1 + $0x14] sm:$0xf]
  %v22 = vld [vmem:[%s1 + $0x18] sm:$0xf]
  %v23 = vld [vmem:[%s1 + $0x1c] sm:$0xf]
  %v24 = vld [vmem:[%s1 + $0x20] sm:$0xf]
  %v34 = vunpack.c.l.b16 %v16
  %v35 = vunpack.c.l.b16 %v17
  %v36 = vunpack.c.l.b16 %v18
  %v37 = vunpack.c.l.b16 %v19
  %v38 = vunpack.c.l.b16 %v20
  %v39 = vunpack.c.l.b16 %v21
  %v40 = vunpack.c.l.b16 %v22
  %v41 = vunpack.c.l.b16 %v23
  %v42 = vunpack.c.l.b16 %v24
  %v43 = vpack.c.b16 %v35, %v34
  %v44 = vpack.c.b16 %v37, %v36
  %v45 = vpack.c.b16 %v39, %v38
  %v46 = vpack.c.b16 %v41, %v40
  %v47 = vpack.c.b16 %v42, %v42
  %vm52 = vcmask 588800
  %v54 = vsel %vm52, %v15, 0
  %vm56 = vcmask 1043456
  %v58 = vsel %vm56, %v47, 0
  %60 = vmatprep.subr.bf16.mxu0 0
  %61 = vmatpush1.bf16.msra.mxu0 0
  %62 = vmatprep.subr.bf16.mxu0 0
  %63 = vmatpush1.bf16.msra.mxu0 0
  %64 = vmatprep.subr.bf16.mxu0 0
  %65 = vmatpush1.bf16.msra.mxu0 0
  %66 = vmatprep.subr.bf16.mxu0 0
  %67 = vmatpush1.bf16.msra.mxu0 %v58
  %68 = vmatprep.subr.bf16.mxu0 0
  %69 = vmatpush1.bf16.msra.mxu0 %v46
  %70 = vmatprep.subr.bf16.mxu0 0
  %71 = vmatpush1.bf16.msra.mxu0 %v45
  %72 = vmatprep.subr.bf16.mxu0 0
  %73 = vmatpush1.bf16.msra.mxu0 %v44
  %74 = vmatprep.subr.bf16.mxu0 0
  %75 = vmatpush1.bf16.msra.mxu0 %v43
  %76 = vmatprep.subr.bf16.mxu0 0
  %77 = vmatpush2.bf16.msra.mxu0 0
  %78 = vmatprep.subr.bf16.mxu0 0
  %79 = vmatpush2.bf16.msra.mxu0 0
  %80 = vmatprep.subr.bf16.mxu0 0
  %81 = vmatpush2.bf16.msra.mxu0 0
  %82 = vmatprep.subr.bf16.mxu0 0
  %83 = vmatpush2.bf16.msra.mxu0 0
  %84 = vmatprep.subr.bf16.mxu0 0
  %85 = vmatpush2.bf16.msra.mxu0 0
  %86 = vmatprep.subr.bf16.mxu0 0
  %87 = vmatpush2.bf16.msra.mxu0 0
  %88 = vmatprep.subr.bf16.mxu0 0
  %89 = vmatpush2.bf16.msra.mxu0 0
  %90 = vmatprep.subr.bf16.mxu0 0
  %91 = vmatpush2.bf16.msra.mxu0 0
  %92 = vmatprep.mubr.bf16.mxu0 0
  %93 = vmatmul.mubr.bf16.gmra.mxu0 %v54
  %v94 = vpop.f32.mrf.mxu0
  %v95 = vadd.f32 0.0, %v94
  %v96 = vpop.f32.mrf.mxu0
  %v97 = vpop.f32.mrf.mxu0
  %v98 = vpop.f32.mrf.mxu0
  %99 = vdwg.mxu0
  %v100 = vld [vmem:[%s2] sm:$0xff]
  %v101 = vmul.f32 %v100, %v95
  %102 = vst [vmem:[%s3] sm:$0xff] %v101
  // Predicated region
  $region14: #{lrp_model_forward.28} parent=0 // pred_check
    _
  $region15: #{lrp_model_forward.28} parent=0 // pred_check_branch
    %104 = sbr.rel (0) target = $region17
  $region16: #{lrp_model_forward.28} parent=0 // pred_region
    _
  $region17: #{lrp_model_forward.28} parent=0 // pred_fallthru
    _
  // Predicated region
  $region18: #{lrp_model_forward.28} parent=0 // pred_check
    _
  $region19: #{lrp_model_forward.28} parent=0 // pred_check_branch
    %106 = sbr.rel (0) target = $region21
  $region20: #{lrp_model_forward.28} parent=0 // pred_region
    _
  $region21: #{lrp_model_forward.28} parent=0 // pred_fallthru
    _

// kernel: lrp_model_forward.29
$region0: #{lrp_model_forward.29}
  #allocation0 [shape = 'u32[]', space=smem, size = 0x4, offset = 0x4, fixed_abs, tag = 'smem constant byte address 0x4 - core index']
  #allocation1 [shape = 'u32[144,128]{1,0:T(1,128)}', space=vmem, size = 0x12000, scoped, tag = 'internal scratch']
  %s0 = inlined_call_operand.vmem [shape: f32[8,512], index: 0, kind: input, shape index: {}]
  %s1 = inlined_call_operand.vmem [shape: f32[8,512], index: 1, kind: input, shape index: {}]
  %s2 = inlined_call_operand.vmem [shape: f32[8,512], index: 2, kind: input, shape index: {}]
  %s3 = inlined_call_operand.vmem [shape: f32[8,512], index: 3, kind: output, shape index: {}]
  %s4 = sld [smem:[#allocation0]]
  $region22: #{lrp_model_forward.29} parent=0
    _
  %s6 = ssub.s32 1, %s4
  %s7 = scalar_select 0, %s6, %s4
  // Predicated region
  $region2: #{lrp_model_forward.29} parent=0 // pred_check
    _
  $region3: #{lrp_model_forward.29} parent=0 // pred_check_branch
    %9 = sbr.rel (0) target = $region5
  $region4: #{lrp_model_forward.29} parent=0 // pred_region
    _
  $region5: #{lrp_model_forward.29} parent=0 // pred_fallthru
    _
  // Predicated region
  $region6: #{lrp_model_forward.29} parent=0 // pred_check
    _
  $region7: #{lrp_model_forward.29} parent=0 // pred_check_branch
    %11 = sbr.rel (0) target = $region9
  $region8: #{lrp_model_forward.29} parent=0 // pred_region
    _
  $region9: #{lrp_model_forward.29} parent=0 // pred_fallthru
    _
  // Predicated region
  $region10: #{lrp_model_forward.29} parent=0 // pred_check
    _
  $region11: #{lrp_model_forward.29} parent=0 // pred_check_branch
    %13 = sbr.rel (0) target = $region13
  $region12: #{lrp_model_forward.29} parent=0 // pred_region
    _
  $region13: #{lrp_model_forward.29} parent=0 // pred_fallthru
    _
  %v14 = vld [vmem:[%s0] sm:$0xff]
  %v15 = vld [vmem:[%s0 + $0x8] sm:$0xff]
  %v16 = vld [vmem:[%s0 + $0x10] sm:$0xff]
  %v17 = vld [vmem:[%s0 + $0x18] sm:$0xff]
  %v18 = vld [vmem:[%s1] sm:$0xff]
  %v19 = vld [vmem:[%s1 + $0x8] sm:$0xff]
  %v20 = vld [vmem:[%s1 + $0x10] sm:$0xff]
  %v21 = vld [vmem:[%s1 + $0x18] sm:$0xff]
  %v22 = vld [vmem:[%s2] sm:$0xff]
  %v23 = vld [vmem:[%s2 + $0x8] sm:$0xff]
  %v24 = vld [vmem:[%s2 + $0x10] sm:$0xff]
  %v25 = vld [vmem:[%s2 + $0x18] sm:$0xff]
  %v26 = vadd.f32 %v22, 1e-05
  %v27 = vadd.f32 %v23, 1e-05
  %v28 = vadd.f32 %v24, 1e-05
  %v29 = vadd.f32 %v25, 1e-05
  %v30 = vrcp.pop %v26
  %v31 = vmul.f32 %v18, %v30
  %v32 = vrcp.pop %v27
  %v33 = vmul.f32 %v19, %v32
  %v34 = vrcp.pop %v28
  %v35 = vmul.f32 %v20, %v34
  %v36 = vrcp.pop %v29
  %v37 = vmul.f32 %v21, %v36
  %v38 = vmul.f32 %v14, %v31
  %v39 = vmul.f32 %v15, %v33
  %v40 = vmul.f32 %v16, %v35
  %v41 = vmul.f32 %v17, %v37
  %v42 = vmul.f32 %v38, 0.25
  %v43 = vmul.f32 %v39, 0.25
  %v44 = vmul.f32 %v40, 0.25
  %v45 = vmul.f32 %v41, 0.25
  %46 = vst [vmem:[%s3] sm:$0xff] %v42
  %47 = vst [vmem:[%s3 + $0x8] sm:$0xff] %v43
  %48 = vst [vmem:[%s3 + $0x10] sm:$0xff] %v44
  %49 = vst [vmem:[%s3 + $0x18] sm:$0xff] %v45
  // Predicated region
  $region14: #{lrp_model_forward.29} parent=0 // pred_check
    _
  $region15: #{lrp_model_forward.29} parent=0 // pred_check_branch
    %51 = sbr.rel (0) target = $region17
  $region16: #{lrp_model_forward.29} parent=0 // pred_region
    _
  $region17: #{lrp_model_forward.29} parent=0 // pred_fallthru
    _
  // Predicated region
  $region18: #{lrp_model_forward.29} parent=0 // pred_check
    _
  $region19: #{lrp_model_forward.29} parent=0 // pred_check_branch
    %53 = sbr.rel (0) target = $region21
  $region20: #{lrp_model_forward.29} parent=0 // pred_region
    _
  $region21: #{lrp_model_forward.29} parent=0 // pred_fallthru
    _

// kernel: lrp_model_forward.30
$region0: #{lrp_model_forward.30}
  #allocation0 [shape = 'u32[]', space=smem, size = 0x4, offset = 0x4, fixed_abs, tag = 'smem constant byte address 0x4 - core index']
  #allocation1 [shape = 'u32[144,128]{1,0:T(1,128)}', space=vmem, size = 0x12000, scoped, tag = 'internal scratch']
  %s0 = inlined_call_operand.vmem [shape: bf16[8,40], index: 0, kind: input, shape index: {}]
  %s1 = inlined_call_operand.vmem [shape: bf16[40,512], index: 1, kind: input, shape index: {}]
  %s2 = inlined_call_operand.vmem [shape: f32[8,512], index: 2, kind: input, shape index: {}]
  %s3 = inlined_call_operand.vmem [shape: f32[8,512], index: 3, kind: output, shape index: {}]
  %s4 = sld [smem:[#allocation0]]
  $region22: #{lrp_model_forward.30} parent=0
    _
  %s6 = ssub.s32 1, %s4
  %s7 = scalar_select 0, %s6, %s4
  // Predicated region
  $region2: #{lrp_model_forward.30} parent=0 // pred_check
    _
  $region3: #{lrp_model_forward.30} parent=0 // pred_check_branch
    %9 = sbr.rel (0) target = $region5
  $region4: #{lrp_model_forward.30} parent=0 // pred_region
    _
  $region5: #{lrp_model_forward.30} parent=0 // pred_fallthru
    _
  // Predicated region
  $region6: #{lrp_model_forward.30} parent=0 // pred_check
    _
  $region7: #{lrp_model_forward.30} parent=0 // pred_check_branch
    %11 = sbr.rel (0) target = $region9
  $region8: #{lrp_model_forward.30} parent=0 // pred_region
    _
  $region9: #{lrp_model_forward.30} parent=0 // pred_fallthru
    _
  // Predicated region
  $region10: #{lrp_model_forward.30} parent=0 // pred_check
    _
  $region11: #{lrp_model_forward.30} parent=0 // pred_check_branch
    %13 = sbr.rel (0) target = $region13
  $region12: #{lrp_model_forward.30} parent=0 // pred_region
    _
  $region13: #{lrp_model_forward.30} parent=0 // pred_fallthru
    _
  %v15 = vld [vmem:[%s0] sm:$0xf]
  %v16 = vld [vmem:[%s1] sm:$0xff]
  %v17 = vld [vmem:[%s1 + $0x8] sm:$0xff]
  %v18 = vld [vmem:[%s1 + $0x10] sm:$0xff]
  %v19 = vld [vmem:[%s1 + $0x18] sm:$0xff]
  %v20 = vld [vmem:[%s1 + $0x20] sm:$0xff]
  %v21 = vld [vmem:[%s1 + $0x28] sm:$0xff]
  %v22 = vld [vmem:[%s1 + $0x30] sm:$0xff]
  %v23 = vld [vmem:[%s1 + $0x38] sm:$0xff]
  %v24 = vld [vmem:[%s1 + $0x40] sm:$0xff]
  %v25 = vld [vmem:[%s1 + $0x48] sm:$0xff]
  %v26 = vld [vmem:[%s2] sm:$0xff]
  %v27 = vld [vmem:[%s2 + $0x8] sm:$0xff]
  %v28 = vld [vmem:[%s2 + $0x10] sm:$0xff]
  %v29 = vld [vmem:[%s2 + $0x18] sm:$0xff]
  %v40 = vunpack.c.l.b16 %v16
  %v41 = vunpack.c.h.b16 %v16
  %v42 = vunpack.c.l.b16 %v17
  %v43 = vunpack.c.h.b16 %v17
  %v44 = vunpack.c.l.b16 %v18
  %v45 = vunpack.c.h.b16 %v18
  %v46 = vunpack.c.l.b16 %v19
  %v47 = vunpack.c.h.b16 %v19
  %v48 = vunpack.c.l.b16 %v20
  %v49 = vunpack.c.h.b16 %v20
  %v50 = vunpack.c.l.b16 %v21
  %v51 = vunpack.c.h.b16 %v21
  %v52 = vunpack.c.l.b16 %v22
  %v53 = vunpack.c.h.b16 %v22
  %v54 = vunpack.c.l.b16 %v23
  %v55 = vunpack.c.h.b16 %v23
  %v56 = vunpack.c.l.b16 %v24
  %v57 = vunpack.c.h.b16 %v24
  %v58 = vunpack.c.l.b16 %v25
  %v59 = vunpack.c.h.b16 %v25
  %v60 = vpack.c.b16 %v44, %v40
  %v61 = vpack.c.b16 %v45, %v41
  %v62 = vpack.c.b16 %v46, %v42
  %v63 = vpack.c.b16 %v47, %v43
  %v64 = vpack.c.b16 %v52, %v48
  %v65 = vpack.c.b16 %v53, %v49
  %v66 = vpack.c.b16 %v54, %v50
  %v67 = vpack.c.b16 %v55, %v51
  %v68 = vpack.c.b16 %v56, %v56
  %v69 = vpack.c.b16 %v57, %v57
  %v70 = vpack.c.b16 %v58, %v58
  %v71 = vpack.c.b16 %v59, %v59
  %vm80 = vcmask 326656
  %v82 = vsel %vm80, %v15, 0
  %vm84 = vcmask 1043456
  %v86 = vsel %vm84, %v68, 0
  %v89 = vsel %vm84, %v69, 0
  %v92 = vsel %vm84, %v70, 0
  %v95 = vsel %vm84, %v71, 0
  %97 = vmatprep.subr.bf16.mxu0 0
  %98 = vmatpush1.bf16.msra.mxu0 0
  %99 = vmatprep.subr.bf16.mxu0 0
  %100 = vmatpush1.bf16.msra.mxu0 0
  %101 = vmatprep.subr.bf16.mxu0 0
  %102 = vmatpush1.bf16.msra.mxu0 0
  %103 = vmatprep.subr.bf16.mxu0 0
  %104 = vmatpush1.bf16.msra.mxu0 0
  %105 = vmatprep.subr.bf16.mxu0 0
  %106 = vmatpush1.bf16.msra.mxu0 0
  %107 = vmatprep.subr.bf16.mxu0 %v89
  %108 = vmatpush1.bf16.msra.mxu0 %v86
  %109 = vmatprep.subr.bf16.mxu0 %v65
  %110 = vmatpush1.bf16.msra.mxu0 %v64
  %111 = vmatprep.subr.bf16.mxu0 %v61
  %112 = vmatpush1.bf16.msra.mxu0 %v60
  %113 = vmatprep.subr.bf16.mxu0 0
  %114 = vmatpush2.bf16.msra.mxu0 0
  %115 = vmatprep.subr.bf16.mxu0 0
  %116 = vmatpush2.bf16.msra.mxu0 0
  %117 = vmatprep.subr.bf16.mxu0 0
  %118 = vmatpush2.bf16.msra.mxu0 0
  %119 = vmatprep.subr.bf16.mxu0 0
  %120 = vmatpush2.bf16.msra.mxu0 0
  %121 = vmatprep.subr.bf16.mxu0 0
  %122 = vmatpush2.bf16.msra.mxu0 0
  %123 = vmatprep.subr.bf16.mxu0 0
  %124 = vmatpush2.bf16.msra.mxu0 0
  %125 = vmatprep.subr.bf16.mxu0 0
  %126 = vmatpush2.bf16.msra.mxu0 0
  %127 = vmatprep.subr.bf16.mxu0 0
  %128 = vmatpush2.bf16.msra.mxu0 0
  %129 = vmatprep.mubr.bf16.mxu0 0
  %130 = vmatmul.mubr.bf16.gmra.mxu0 %v82
  %v131 = vpop.f32.mrf.mxu0
  %v132 = vadd.f32 1e-05, %v131
  %v133 = vpop.f32.mrf.mxu0
  %v134 = vadd.f32 1e-05, %v133
  %v135 = vpop.f32.mrf.mxu0
  %v136 = vpop.f32.mrf.mxu0
  %137 = vdwg.mxu0
  %138 = vmatprep.subr.bf16.mxu0 0
  %139 = vmatpush1.bf16.msra.mxu0 0
  %140 = vmatprep.subr.bf16.mxu0 0
  %141 = vmatpush1.bf16.msra.mxu0 0
  %142 = vmatprep.subr.bf16.mxu0 0
  %143 = vmatpush1.bf16.msra.mxu0 0
  %144 = vmatprep.subr.bf16.mxu0 0
  %145 = vmatpush1.bf16.msra.mxu0 0
  %146 = vmatprep.subr.bf16.mxu0 0
  %147 = vmatpush1.bf16.msra.mxu0 0
  %148 = vmatprep.subr.bf16.mxu0 %v95
  %149 = vmatpush1.bf16.msra.mxu0 %v92
  %150 = vmatprep.subr.bf16.mxu0 %v67
  %151 = vmatpush1.bf16.msra.mxu0 %v66
  %152 = vmatprep.subr.bf16.mxu0 %v63
  %153 = vmatpush1.bf16.msra.mxu0 %v62
  %154 = vmatprep.subr.bf16.mxu0 0
  %155 = vmatpush2.bf16.msra.mxu0 0
  %156 = vmatprep.subr.bf16.mxu0 0
  %157 = vmatpush2.bf16.msra.mxu0 0
  %158 = vmatprep.subr.bf16.mxu0 0
  %159 = vmatpush2.bf16.msra.mxu0 0
  %160 = vmatprep.subr.bf16.mxu0 0
  %161 = vmatpush2.bf16.msra.mxu0 0
  %162 = vmatprep.subr.bf16.mxu0 0
  %163 = vmatpush2.bf16.msra.mxu0 0
  %164 = vmatprep.subr.bf16.mxu0 0
  %165 = vmatpush2.bf16.msra.mxu0 0
  %166 = vmatprep.subr.bf16.mxu0 0
  %167 = vmatpush2.bf16.msra.mxu0 0
  %168 = vmatprep.subr.bf16.mxu0 0
  %169 = vmatpush2.bf16.msra.mxu0 0
  %170 = vmatprep.mubr.bf16.mxu0 0
  %171 = vmatmul.mubr.bf16.gmra.mxu0 %v82
  %v172 = vpop.f32.mrf.mxu0
  %v173 = vadd.f32 1e-05, %v172
  %v174 = vpop.f32.mrf.mxu0
  %v175 = vadd.f32 1e-05, %v174
  %v176 = vpop.f32.mrf.mxu0
  %v177 = vpop.f32.mrf.mxu0
  %178 = vdwg.mxu0
  %v179 = vrcp.pop %v132
  %v180 = vmul.f32 %v26, %v179
  %v181 = vrcp.pop %v134
  %v182 = vmul.f32 %v27, %v181
  %v183 = vrcp.pop %v173
  %v184 = vmul.f32 %v28, %v183
  %v185 = vrcp.pop %v175
  %v186 = vmul.f32 %v29, %v185
  %187 = vst [vmem:[%s3] sm:$0xff] %v180
  %188 = vst [vmem:[%s3 + $0x8] sm:$0xff] %v182
  %189 = vst [vmem:[%s3 + $0x10] sm:$0xff] %v184
  %190 = vst [vmem:[%s3 + $0x18] sm:$0xff] %v186
  // Predicated region
  $region14: #{lrp_model_forward.30} parent=0 // pred_check
    _
  $region15: #{lrp_model_forward.30} parent=0 // pred_check_branch
    %192 = sbr.rel (0) target = $region17
  $region16: #{lrp_model_forward.30} parent=0 // pred_region
    _
  $region17: #{lrp_model_forward.30} parent=0 // pred_fallthru
    _
  // Predicated region
  $region18: #{lrp_model_forward.30} parent=0 // pred_check
    _
  $region19: #{lrp_model_forward.30} parent=0 // pred_check_branch
    %194 = sbr.rel (0) target = $region21
  $region20: #{lrp_model_forward.30} parent=0 // pred_region
    _
  $region21: #{lrp_model_forward.30} parent=0 // pred_fallthru
    _

// kernel: lrp_model_forward.31
$region0: #{lrp_model_forward.31}
  #allocation0 [shape = 'u32[]', space=smem, size = 0x4, offset = 0x4, fixed_abs, tag = 'smem constant byte address 0x4 - core index']
  #allocation1 [shape = 'u32[144,128]{1,0:T(1,128)}', space=vmem, size = 0x12000, scoped, tag = 'internal scratch']
  %s0 = inlined_call_operand.vmem [shape: bf16[4,72], index: 0, kind: input, shape index: {}]
  %s1 = inlined_call_operand.vmem [shape: bf16[72,512], index: 1, kind: input, shape index: {}]
  %s2 = inlined_call_operand.vmem [shape: f32[4,512], index: 2, kind: input, shape index: {}]
  %s3 = inlined_call_operand.vmem [shape: f32[4,512], index: 3, kind: output, shape index: {}]
  %s4 = sld [smem:[#allocation0]]
  $region22: #{lrp_model_forward.31} parent=0
    _
  %s6 = ssub.s32 1, %s4
  %s7 = scalar_select 0, %s6, %s4
  // Predicated region
  $region2: #{lrp_model_forward.31} parent=0 // pred_check
    _
  $region3: #{lrp_model_forward.31} parent=0 // pred_check_branch
    %9 = sbr.rel (0) target = $region5
  $region4: #{lrp_model_forward.31} parent=0 // pred_region
    _
  $region5: #{lrp_model_forward.31} parent=0 // pred_fallthru
    _
  // Predicated region
  $region6: #{lrp_model_forward.31} parent=0 // pred_check
    _
  $region7: #{lrp_model_forward.31} parent=0 // pred_check_branch
    %11 = sbr.rel (0) target = $region9
  $region8: #{lrp_model_forward.31} parent=0 // pred_region
    _
  $region9: #{lrp_model_forward.31} parent=0 // pred_fallthru
    _
  // Predicated region
  $region10: #{lrp_model_forward.31} parent=0 // pred_check
    _
  $region11: #{lrp_model_forward.31} parent=0 // pred_check_branch
    %13 = sbr.rel (0) target = $region13
  $region12: #{lrp_model_forward.31} parent=0 // pred_region
    _
  $region13: #{lrp_model_forward.31} parent=0 // pred_fallthru
    _
  %v15 = vld [vmem:[%s0] sm:$0x3]
  %v16 = vld [vmem:[%s1] sm:$0xff]
  %v17 = vld [vmem:[%s1 + $0x8] sm:$0xff]
  %v18 = vld [vmem:[%s1 + $0x10] sm:$0xff]
  %v19 = vld [vmem:[%s1 + $0x18] sm:$0xff]
  %v20 = vld [vmem:[%s1 + $0x20] sm:$0xff]
  %v21 = vld [vmem:[%s1 + $0x28] sm:$0xff]
  %v22 = vld [vmem:[%s1 + $0x30] sm:$0xff]
  %v23 = vld [vmem:[%s1 + $0x38] sm:$0xff]
  %v24 = vld [vmem:[%s1 + $0x40] sm:$0xff]
  %v25 = vld [vmem:[%s1 + $0x48] sm:$0xff]
  %v26 = vld [vmem:[%s1 + $0x50] sm:$0xff]
  %v27 = vld [vmem:[%s1 + $0x58] sm:$0xff]
  %v28 = vld [vmem:[%s1 + $0x60] sm:$0xff]
  %v29 = vld [vmem:[%s1 + $0x68] sm:$0xff]
  %v30 = vld [vmem:[%s1 + $0x70] sm:$0xff]
  %v31 = vld [vmem:[%s1 + $0x78] sm:$0xff]
  %v32 = vld [vmem:[%s1 + $0x80] sm:$0xff]
  %v33 = vld [vmem:[%s1 + $0x88] sm:$0xff]
  %v52 = vunpack.c.l.b16 %v16
  %v53 = vunpack.c.h.b16 %v16
  %v54 = vunpack.c.l.b16 %v17
  %v55 = vunpack.c.h.b16 %v17
  %v56 = vunpack.c.l.b16 %v18
  %v57 = vunpack.c.h.b16 %v18
  %v58 = vunpack.c.l.b16 %v19
  %v59 = vunpack.c.h.b16 %v19
  %v60 = vunpack.c.l.b16 %v20
  %v61 = vunpack.c.h.b16 %v20
  %v62 = vunpack.c.l.b16 %v21
  %v63 = vunpack.c.h.b16 %v21
  %v64 = vunpack.c.l.b16 %v22
  %v65 = vunpack.c.h.b16 %v22
  %v66 = vunpack.c.l.b16 %v23
  %v67 = vunpack.c.h.b16 %v23
  %v68 = vunpack.c.l.b16 %v24
  %v69 = vunpack.c.h.b16 %v24
  %v70 = vunpack.c.l.b16 %v25
  %v71 = vunpack.c.h.b16 %v25
  %v72 = vunpack.c.l.b16 %v26
  %v73 = vunpack.c.h.b16 %v26
  %v74 = vunpack.c.l.b16 %v27
  %v75 = vunpack.c.h.b16 %v27
  %v76 = vunpack.c.l.b16 %v28
  %v77 = vunpack.c.h.b16 %v28
  %v78 = vunpack.c.l.b16 %v29
  %v79 = vunpack.c.h.b16 %v29
  %v80 = vunpack.c.l.b16 %v30
  %v81 = vunpack.c.h.b16 %v30
  %v82 = vunpack.c.l.b16 %v31
  %v83 = vunpack.c.h.b16 %v31
  %v84 = vunpack.c.l.b16 %v32
  %v85 = vunpack.c.h.b16 %v32
  %v86 = vunpack.c.l.b16 %v33
  %v87 = vunpack.c.h.b16 %v33
  %v88 = vpack.c.b16 %v56, %v52
  %v89 = vpack.c.b16 %v57, %v53
  %v90 = vpack.c.b16 %v58, %v54
  %v91 = vpack.c.b16 %v59, %v55
  %v92 = vpack.c.b16 %v64, %v60
  %v93 = vpack.c.b16 %v65, %v61
  %v94 = vpack.c.b16 %v66, %v62
  %v95 = vpack.c.b16 %v67, %v63
  %v96 = vpack.c.b16 %v72, %v68
  %v97 = vpack.c.b16 %v73, %v69
  %v98 = vpack.c.b16 %v74, %v70
  %v99 = vpack.c.b16 %v75, %v71
  %v100 = vpack.c.b16 %v80, %v76
  %v101 = vpack.c.b16 %v81, %v77
  %v102 = vpack.c.b16 %v82, %v78
  %v103 = vpack.c.b16 %v83, %v79
  %v104 = vpack.c.b16 %v84, %v84
  %v105 = vpack.c.b16 %v85, %v85
  %v106 = vpack.c.b16 %v86, %v86
  %v107 = vpack.c.b16 %v87, %v87
  %vm124 = vcmask 588800
  %v126 = vsel %vm124, %v15, 0
  %vm128 = vcmask 1043456
  %v130 = vsel %vm128, %v104, 0
  %v133 = vsel %vm128, %v105, 0
  %v136 = vsel %vm128, %v106, 0
  %v139 = vsel %vm128, %v107, 0
  %141 = vmatprep.subr.bf16.mxu0 0
  %142 = vmatpush1.bf16.msra.mxu0 0
  %143 = vmatprep.subr.bf16.mxu0 0
  %144 = vmatpush1.bf16.msra.mxu0 0
  %145 = vmatprep.subr.bf16.mxu0 0
  %146 = vmatpush1.bf16.msra.mxu0 0
  %147 = vmatprep.subr.bf16.mxu0 %v133
  %148 = vmatpush1.bf16.msra.mxu0 %v130
  %149 = vmatprep.subr.bf16.mxu0 %v101
  %150 = vmatpush1.bf16.msra.mxu0 %v100
  %151 = vmatprep.subr.bf16.mxu0 %v97
  %152 = vmatpush1.bf16.msra.mxu0 %v96
  %153 = vmatprep.subr.bf16.mxu0 %v93
  %154 = vmatpush1.bf16.msra.mxu0 %v92
  %155 = vmatprep.subr.bf16.mxu0 %v89
  %156 = vmatpush1.bf16.msra.mxu0 %v88
  %157 = vmatprep.subr.bf16.mxu0 0
  %158 = vmatpush2.bf16.msra.mxu0 0
  %159 = vmatprep.subr.bf16.mxu0 0
  %160 = vmatpush2.bf16.msra.mxu0 0
  %161 = vmatprep.subr.bf16.mxu0 0
  %162 = vmatpush2.bf16.msra.mxu0 0
  %163 = vmatprep.subr.bf16.mxu0 0
  %164 = vmatpush2.bf16.msra.mxu0 0
  %165 = vmatprep.subr.bf16.mxu0 0
  %166 = vmatpush2.bf16.msra.mxu0 0
  %167 = vmatprep.subr.bf16.mxu0 0
  %168 = vmatpush2.bf16.msra.mxu0 0
  %169 = vmatprep.subr.bf16.mxu0 0
  %170 = vmatpush2.bf16.msra.mxu0 0
  %171 = vmatprep.subr.bf16.mxu0 0
  %172 = vmatpush2.bf16.msra.mxu0 0
  %173 = vmatprep.mubr.bf16.mxu0 0
  %174 = vmatmul.mubr.bf16.gmra.mxu0 %v126
  %v175 = vpop.f32.mrf.mxu0
  %v176 = vadd.f32 0.0, %v175
  %v177 = vpop.f32.mrf.mxu0
  %v178 = vadd.f32 0.0, %v177
  %v179 = vpop.f32.mrf.mxu0
  %v180 = vpop.f32.mrf.mxu0
  %181 = vdwg.mxu0
  %182 = vmatprep.subr.bf16.mxu0 0
  %183 = vmatpush1.bf16.msra.mxu0 0
  %184 = vmatprep.subr.bf16.mxu0 0
  %185 = vmatpush1.bf16.msra.mxu0 0
  %186 = vmatprep.subr.bf16.mxu0 0
  %187 = vmatpush1.bf16.msra.mxu0 0
  %188 = vmatprep.subr.bf16.mxu0 %v139
  %189 = vmatpush1.bf16.msra.mxu0 %v136
  %190 = vmatprep.subr.bf16.mxu0 %v103
  %191 = vmatpush1.bf16.msra.mxu0 %v102
  %192 = vmatprep.subr.bf16.mxu0 %v99
  %193 = vmatpush1.bf16.msra.mxu0 %v98
  %194 = vmatprep.subr.bf16.mxu0 %v95
  %195 = vmatpush1.bf16.msra.mxu0 %v94
  %196 = vmatprep.subr.bf16.mxu0 %v91
  %197 = vmatpush1.bf16.msra.mxu0 %v90
  %198 = vmatprep.subr.bf16.mxu0 0
  %199 = vmatpush2.bf16.msra.mxu0 0
  %200 = vmatprep.subr.bf16.mxu0 0
  %201 = vmatpush2.bf16.msra.mxu0 0
  %202 = vmatprep.subr.bf16.mxu0 0
  %203 = vmatpush2.bf16.msra.mxu0 0
  %204 = vmatprep.subr.bf16.mxu0 0
  %205 = vmatpush2.bf16.msra.mxu0 0
  %206 = vmatprep.subr.bf16.mxu0 0
  %207 = vmatpush2.bf16.msra.mxu0 0
  %208 = vmatprep.subr.bf16.mxu0 0
  %209 = vmatpush2.bf16.msra.mxu0 0
  %210 = vmatprep.subr.bf16.mxu0 0
  %211 = vmatpush2.bf16.msra.mxu0 0
  %212 = vmatprep.subr.bf16.mxu0 0
  %213 = vmatpush2.bf16.msra.mxu0 0
  %214 = vmatprep.mubr.bf16.mxu0 0
  %215 = vmatmul.mubr.bf16.gmra.mxu0 %v126
  %v216 = vpop.f32.mrf.mxu0
  %v217 = vadd.f32 0.0, %v216
  %v218 = vpop.f32.mrf.mxu0
  %v219 = vadd.f32 0.0, %v218
  %v220 = vpop.f32.mrf.mxu0
  %v221 = vpop.f32.mrf.mxu0
  %222 = vdwg.mxu0
  %v223 = vld [vmem:[%s2] sm:$0xff]
  %v224 = vld [vmem:[%s2 + $0x8] sm:$0xff]
  %v229 = vcombine.low %v176, %v178
  %v230 = vcombine.low %v217, %v219
  %v233 = vmul.f32 %v223, %v229
  %v234 = vmul.f32 %v224, %v230
  %235 = vst [vmem:[%s3] sm:$0xff] %v233
  %236 = vst [vmem:[%s3 + $0x8] sm:$0xff] %v234
  // Predicated region
  $region14: #{lrp_model_forward.31} parent=0 // pred_check
    _
  $region15: #{lrp_model_forward.31} parent=0 // pred_check_branch
    %238 = sbr.rel (0) target = $region17
  $region16: #{lrp_model_forward.31} parent=0 // pred_region
    _
  $region17: #{lrp_model_forward.31} parent=0 // pred_fallthru
    _
  // Predicated region
  $region18: #{lrp_model_forward.31} parent=0 // pred_check
    _
  $region19: #{lrp_model_forward.31} parent=0 // pred_check_branch
    %240 = sbr.rel (0) target = $region21
  $region20: #{lrp_model_forward.31} parent=0 // pred_region
    _
  $region21: #{lrp_model_forward.31} parent=0 // pred_fallthru
    _

</llo_original>
